<compile_context>
chip_gen: v6e
topology: v6e:2x2x1
jax: 0.10.0
libtpu: 0.0.40
codegen_flags: <defaults>
</compile_context>

<pallas_src>
import functools

import jax
import jax.numpy as jnp
from jax.experimental import pallas as pl
from jax.experimental.pallas import tpu as pltpu

LANE = 128
SUBLANE = 8


def _round_up(x, m):
    return ((x + m - 1) // m) * m


def _pick_vmem_limit():
    """Per-generation VMEM scoped limit (leave headroom below physical)."""
    try:
        cap = pltpu.get_tpu_info().vmem_capacity_bytes
    except Exception:
        cap = 64 * 1024 * 1024  # conservative (v7x-sized) fallback
    return int(min(cap * 3 // 4, 100 * 1024 * 1024))


# ----------------------------------------------------------------------------
# Fused forward kernel (single invocation, everything VMEM/vreg resident)
# ----------------------------------------------------------------------------

def _adagcn_fused_kernel(a_ref, x_ref, pool_ref, w_ref, b_ref, aux_ref,
                         lam_ref, o_ref, *, n_gcn, n_cls):
    """Refs:
      a_ref    (2, PN, PN)  bf16   per-domain D^-1/2 (A+I) D^-1/2
      x_ref    (2, PN, PF)  bf16   per-domain node features (zero-padded)
      pool_ref (2, PG, PN)  bf16   per-domain mean-pool matrices
      w_ref    (L, PF, PF)  bf16   stacked weights: gcn..., cls..., disc
      b_ref    (L, 1,  PF)  f32    stacked biases
      aux_ref  (4, PG, PF)  f32    [y_onehot, bce_mask, dsign_src, dsign_tgt]
      lam_ref  (1, 1)       f32    SMEM scalar LAMBDA
      o_ref    (8, 128)     f32    rows 0/1/2 = clf / domain / total
    """
    f32, bf16 = jnp.float32, jnp.bfloat16

    # ---- GCN encoder + global_mean_pool, per domain (no block-diag waste) --
    pooled = []
    for d in range(2):
        a = a_ref[d]                                   # (PN, PN) bf16
        h = x_ref[d]                                   # (PN, PF) bf16
        for i in range(n_gcn):
            ah = jnp.dot(a, h, preferred_element_type=f32)        # MXU bf16
            z = jnp.dot(ah.astype(bf16), w_ref[i],
                        preferred_element_type=f32) + b_ref[i]
            if i < n_gcn - 1:
                z = jnp.maximum(z, 0.0)
                # TODO(synk): dropout between GCN layers -> identity (eval).
            h = z.astype(bf16)
        pooled.append(jnp.dot(pool_ref[d], h,
                              preferred_element_type=f32))        # (PG, PF) f32

    # ---- classifier head on source pooled features --------------------------
    h = pooled[0]
    for j in range(n_cls):
        idx = n_gcn + j
        h = jnp.dot(h.astype(bf16), w_ref[idx],
                    preferred_element_type=f32) + b_ref[idx]
        if j < n_cls - 1:
            h = jnp.maximum(h, 0.0)
    logits = jax.nn.sigmoid(h)                                     # (PG, PF)

    # ---- BCE loss (mean over the real (G_src, num_classes) block) -----------
    y = aux_ref[0]
    bce_w = aux_ref[1]
    log_p = jnp.maximum(jnp.log(jnp.maximum(logits, 1e-38)), -100.0)
    log_1mp = jnp.maximum(jnp.log(jnp.maximum(1.0 - logits, 1e-38)), -100.0)
    clf_loss = jnp.sum(-(y * log_p + (1.0 - y) * log_1mp) * bce_w)

    # ---- discriminator + domain loss ----------------------------------------
    widx = n_gcn + n_cls
    wd, bd = w_ref[widx], b_ref[widx]
    critic_s = jax.nn.sigmoid(
        jnp.dot(pooled[0].astype(bf16), wd, preferred_element_type=f32) + bd)
    critic_t = jax.nn.sigmoid(
        jnp.dot(pooled[1].astype(bf16), wd, preferred_element_type=f32) + bd)
    domain_loss = jnp.abs(jnp.sum(critic_s * aux_ref[2]) +
                          jnp.sum(critic_t * aux_ref[3]))

    total = clf_loss + lam_ref[0, 0] * domain_loss

    # Lane-dense scalar writeback: row 0 = clf, row 1 = domain, row 2 = total.
    row_ids = jax.lax.broadcasted_iota(jnp.int32, o_ref.shape, 0)
    o_ref[...] = jnp.where(row_ids == 0, clf_loss,
                           jnp.where(row_ids == 1, domain_loss,
                                     total)).astype(jnp.float32)


# ----------------------------------------------------------------------------
# One-time preparation: pad operators / pack parameters (off the hot path)
# ----------------------------------------------------------------------------

def prepare_inputs(params, src, tgt):
    x_s, a_s, pool_s, labels_onehot = src
    x_t, a_t, pool_t = tgt

    n_s, n_t = x_s.shape[0], x_t.shape[0]
    g_s, g_t = pool_s.shape[0], pool_t.shape[0]
    num_classes = labels_onehot.shape[1]

    PN = max(LANE, _round_up(max(n_s, n_t), LANE))
    PG = max(SUBLANE, _round_up(max(g_s, g_t), SUBLANE))
    PF = LANE

    def pad_stack(arrs, rows, cols, dtype):
        out = jnp.zeros((len(arrs), rows, cols), dtype)
        for i, arr in enumerate(arrs):
            arr = jnp.asarray(arr)
            out = out.at[i, :arr.shape[0], :arr.shape[1]].set(arr.astype(dtype))
        return out

    a_pad = pad_stack([a_s, a_t], PN, PN, jnp.bfloat16)          # (2,PN,PN)
    x_pad = pad_stack([x_s, x_t], PN, PF, jnp.bfloat16)          # (2,PN,PF)
    pool_pad = pad_stack([pool_s, pool_t], PG, PN, jnp.bfloat16)  # (2,PG,PN)

    all_wb = params["gcn"] + params["cls"] + params["disc"]
    w_all = pad_stack([w for (w, _) in all_wb], PF, PF, jnp.bfloat16)
    b_all = pad_stack([b.reshape(1, -1) for (_, b) in all_wb], 1, PF,
                      jnp.float32)

    y_pad = jnp.zeros((PG, PF), jnp.float32).at[:g_s, :num_classes].set(
        jnp.asarray(labels_onehot, jnp.float32))
    bce_mask = jnp.zeros((PG, PF), jnp.float32).at[:g_s, :num_classes].set(
        1.0 / (g_s * num_classes))
    dsign_s = jnp.zeros((PG, PF), jnp.float32).at[:g_s, 0].set(1.0 / g_s)
    dsign_t = jnp.zeros((PG, PF), jnp.float32).at[:g_t, 0].set(-1.0 / g_t)
    aux = jnp.stack([y_pad, bce_mask, dsign_s, dsign_t], axis=0)  # (4,PG,PF)

    return dict(a=a_pad, x=x_pad, pool=pool_pad, w=w_all, b=b_all, aux=aux,
                n_gcn=len(params["gcn"]), n_cls=len(params["cls"]))


# ----------------------------------------------------------------------------
# Wrapper: one pallas_call, no grid (nothing to pipeline / double-buffer)
# ----------------------------------------------------------------------------

def adagcn_gc_forward(prep, lam):
    """Mirrors ADAGCN_GC.forward for use_igcn=False on prepared operands."""
    lam_arr = jnp.full((1, 1), lam, jnp.float32)

    kernel = functools.partial(_adagcn_fused_kernel,
                               n_gcn=prep["n_gcn"], n_cls=prep["n_cls"])

    vmem_spec = pl.BlockSpec(memory_space=pltpu.MemorySpace.VMEM)
    smem_spec = pl.BlockSpec(memory_space=pltpu.MemorySpace.SMEM)

    out = pl.pallas_call(
        kernel,
        out_shape=jax.ShapeDtypeStruct((SUBLANE, LANE), jnp.float32),
        in_specs=[vmem_spec,   # a      (2, PN, PN) bf16
                  vmem_spec,   # x      (2, PN, PF) bf16
                  vmem_spec,   # pool   (2, PG, PN) bf16
                  vmem_spec,   # w_all  (L, PF, PF) bf16
                  vmem_spec,   # b_all  (L, 1,  PF) f32
                  vmem_spec,   # aux    (4, PG, PF) f32
                  smem_spec],  # lam    (1, 1)      f32
        out_specs=vmem_spec,
        compiler_params=pltpu.CompilerParams(
            vmem_limit_bytes=_pick_vmem_limit()),
    )(prep["a"], prep["x"], prep["pool"], prep["w"], prep["b"], prep["aux"],
      lam_arr)

    clf_loss = out[0, 0]
    domain_loss = out[1, 0]
    total = out[2, 0]
    return total, clf_loss, domain_loss


# ----------------------------------------------------------------------------
# Plain-JAX preprocessing: graph ops + parameter init (not hot-path compute)
# ----------------------------------------------------------------------------

def build_norm_adj(edge_index, num_nodes):
    """Dense D^-1/2 (A + I) D^-1/2, matching torch_geometric gcn_norm."""
    row, col = edge_index[0], edge_index[1]
    a = jnp.zeros((num_nodes, num_nodes), jnp.float32)
    a = a.at[col, row].add(1.0)             # A_hat[dst, src] (source_to_target)
    a = a + jnp.eye(num_nodes, dtype=jnp.float32)
    deg = jnp.sum(a, axis=1)
    dinv = jnp.where(deg > 0, 1.0 / jnp.sqrt(deg), 0.0)
    return dinv[:, None] * a * dinv[None, :]


def build_pool_matrix(batch, num_graphs):
    """global_mean_pool as a dense [num_graphs, num_nodes] averaging matrix."""
    onehot = (batch[None, :] == jnp.arange(num_graphs)[:, None]).astype(jnp.float32)
    counts = jnp.maximum(jnp.sum(onehot, axis=1, keepdims=True), 1.0)
    return onehot / counts


def glorot(key, shape):
    fan_in, fan_out = shape
    lim = jnp.sqrt(6.0 / (fan_in + fan_out))
    return jax.random.uniform(key, shape, jnp.float32, -lim, lim)


def init_params(key, hidden_dims, encoder_dim, num_classes):
    params = {"gcn": [], "cls": [], "disc": []}
    keys = jax.random.split(key, 16)
    ki = 0
    for i in range(len(hidden_dims) - 1):
        w = glorot(keys[ki], (hidden_dims[i], hidden_dims[i + 1])); ki += 1
        b = jnp.zeros((hidden_dims[i + 1],), jnp.float32)
        params["gcn"].append((w, b))
    params["cls"].append((glorot(keys[ki], (encoder_dim, 16)),
                          jnp.zeros((16,), jnp.float32))); ki += 1
    params["cls"].append((glorot(keys[ki], (16, num_classes)),
                          jnp.zeros((num_classes,), jnp.float32))); ki += 1
    params["disc"].append((glorot(keys[ki], (encoder_dim, 1)),
                           jnp.zeros((1,), jnp.float32))); ki += 1
    return params


# ----------------------------------------------------------------------------
# Main
# ----------------------------------------------------------------------------

if __name__ == "__main__":
    key = jax.random.PRNGKey(0)
    k_feat_s, k_feat_t, k_lbl, k_param = jax.random.split(key, 4)

    # Model config
    num_gcn_layers = 2
    hidden_dims = [16, 32, 32]          # len == num_gcn_layers + 1
    encoder_dim = hidden_dims[-1]       # 32
    num_classes = 4
    coeff = {"LAMBDA": 1.0, "LAMBDA_GP": 10.0}   # LAMBDA_GP only used in forward_critic
    assert len(hidden_dims) == num_gcn_layers + 1

    # Synthetic graph batches: 4 graphs x 8 nodes each (ring topology)
    num_graphs = 4
    nodes_per_graph = 8
    num_nodes = num_graphs * nodes_per_graph   # 32

    def make_ring_edges():
        srcs, dsts = [], []
        for g in range(num_graphs):
            base = g * nodes_per_graph
            for j in range(nodes_per_graph):
                a = base + j
                b = base + (j + 1) % nodes_per_graph
                srcs += [a, b]
                dsts += [b, a]
        return jnp.array([srcs, dsts], dtype=jnp.int32)

    edge_index_s = make_ring_edges()
    edge_index_t = make_ring_edges()
    batch_s = jnp.repeat(jnp.arange(num_graphs, dtype=jnp.int32), nodes_per_graph)
    batch_t = jnp.repeat(jnp.arange(num_graphs, dtype=jnp.int32), nodes_per_graph)

    x_s = jax.random.normal(k_feat_s, (num_nodes, hidden_dims[0]), jnp.float32)
    x_t = jax.random.normal(k_feat_t, (num_nodes, hidden_dims[0]), jnp.float32)
    labels_s = jax.random.randint(k_lbl, (num_graphs,), 0, num_classes)
    labels_onehot = jax.nn.one_hot(labels_s, num_classes, dtype=jnp.float32)

    a_hat_s = build_norm_adj(edge_index_s, num_nodes)
    a_hat_t = build_norm_adj(edge_index_t, num_nodes)
    pool_s = build_pool_matrix(batch_s, num_graphs)
    pool_t = build_pool_matrix(batch_t, num_graphs)

    params = init_params(k_param, hidden_dims, encoder_dim, num_classes)

    # One-time padding / packing (cached across steps in real training loops).
    prep = prepare_inputs(
        params,
        src=(x_s, a_hat_s, pool_s, labels_onehot),
        tgt=(x_t, a_hat_t, pool_t),
    )

    total, clf_loss, domain_loss = adagcn_gc_forward(prep, coeff["LAMBDA"])
    total = jax.block_until_ready(total)
    clf_loss = jax.block_until_ready(clf_loss)
    domain_loss = jax.block_until_ready(domain_loss)

    assert jnp.isfinite(total) and jnp.isfinite(clf_loss) and jnp.isfinite(domain_loss)
    print("KERNEL_OK")
</pallas_src>

<mosaic_0001>
module attributes {stable_mosaic.version = 11 : i64} {
  func.func @_adagcn_fused_kernel(%arg0: memref<2x128x128xbf16, #tpu.memory_space<vmem>>, %arg1: memref<2x128x128xbf16, #tpu.memory_space<vmem>>, %arg2: memref<2x8x128xbf16, #tpu.memory_space<vmem>>, %arg3: memref<5x128x128xbf16, #tpu.memory_space<vmem>>, %arg4: memref<5x1x128xf32, #tpu.memory_space<vmem>>, %arg5: memref<4x8x128xf32, #tpu.memory_space<vmem>>, %arg6: memref<1x1xf32, #tpu.memory_space<smem>>, %arg7: memref<8x128xf32, #tpu.memory_space<vmem>>) attributes {dimension_semantics = [], scalar_prefetch = 0 : i64, scratch_operands = 0 : i64, tpu.core_type = #tpu.core_type<tc>} {
    %c0 = arith.constant 0 : index
    %c0_0 = arith.constant 0 : index
    %c0_1 = arith.constant 0 : index
    %0 = vector.load %arg0[%c0, %c0_0, %c0_1] : memref<2x128x128xbf16, #tpu.memory_space<vmem>>, vector<1x128x128xbf16>
    %1 = vector.shape_cast %0 : vector<1x128x128xbf16> to vector<128x128xbf16>
    %c0_2 = arith.constant 0 : index
    %c0_3 = arith.constant 0 : index
    %c0_4 = arith.constant 0 : index
    %2 = vector.load %arg1[%c0_2, %c0_3, %c0_4] : memref<2x128x128xbf16, #tpu.memory_space<vmem>>, vector<1x128x128xbf16>
    %3 = vector.shape_cast %2 : vector<1x128x128xbf16> to vector<128x128xbf16>
    %cst = arith.constant dense<0.000000e+00> : vector<128x128xf32>
    %4 = tpu.matmul %1, %3, %cst {dimension_numbers = #tpu.dot_dimension_numbers<[1], [0], [0], [1], [0, 0, 1, 1], [], []>} : vector<128x128xbf16>, vector<128x128xbf16>, vector<128x128xf32> -> vector<128x128xf32>
    %5 = arith.truncf %4 : vector<128x128xf32> to vector<128x128xbf16>
    %c0_5 = arith.constant 0 : index
    %c0_6 = arith.constant 0 : index
    %c0_7 = arith.constant 0 : index
    %6 = vector.load %arg3[%c0_5, %c0_6, %c0_7] : memref<5x128x128xbf16, #tpu.memory_space<vmem>>, vector<1x128x128xbf16>
    %7 = vector.shape_cast %6 : vector<1x128x128xbf16> to vector<128x128xbf16>
    %cst_8 = arith.constant dense<0.000000e+00> : vector<128x128xf32>
    %8 = tpu.matmul %5, %7, %cst_8 {dimension_numbers = #tpu.dot_dimension_numbers<[1], [0], [0], [1], [0, 0, 1, 1], [], []>} : vector<128x128xbf16>, vector<128x128xbf16>, vector<128x128xf32> -> vector<128x128xf32>
    %c0_9 = arith.constant 0 : index
    %c0_10 = arith.constant 0 : index
    %c0_11 = arith.constant 0 : index
    %9 = vector.load %arg4[%c0_9, %c0_10, %c0_11] : memref<5x1x128xf32, #tpu.memory_space<vmem>>, vector<1x1x128xf32>
    %10 = vector.shape_cast %9 : vector<1x1x128xf32> to vector<1x128xf32>
    %11 = vector.broadcast %10 : vector<1x128xf32> to vector<128x128xf32>
    %12 = arith.addf %8, %11 : vector<128x128xf32>
    %cst_12 = arith.constant 0.000000e+00 : f32
    %13 = vector.broadcast %cst_12 : f32 to vector<128x128xf32>
    %14 = arith.maximumf %12, %13 : vector<128x128xf32>
    %15 = arith.truncf %14 : vector<128x128xf32> to vector<128x128xbf16>
    %cst_13 = arith.constant dense<0.000000e+00> : vector<128x128xf32>
    %16 = tpu.matmul %1, %15, %cst_13 {dimension_numbers = #tpu.dot_dimension_numbers<[1], [0], [0], [1], [0, 0, 1, 1], [], []>} : vector<128x128xbf16>, vector<128x128xbf16>, vector<128x128xf32> -> vector<128x128xf32>
    %17 = arith.truncf %16 : vector<128x128xf32> to vector<128x128xbf16>
    %c1 = arith.constant 1 : index
    %c0_14 = arith.constant 0 : index
    %c0_15 = arith.constant 0 : index
    %18 = vector.load %arg3[%c1, %c0_14, %c0_15] : memref<5x128x128xbf16, #tpu.memory_space<vmem>>, vector<1x128x128xbf16>
    %19 = vector.shape_cast %18 : vector<1x128x128xbf16> to vector<128x128xbf16>
    %cst_16 = arith.constant dense<0.000000e+00> : vector<128x128xf32>
    %20 = tpu.matmul %17, %19, %cst_16 {dimension_numbers = #tpu.dot_dimension_numbers<[1], [0], [0], [1], [0, 0, 1, 1], [], []>} : vector<128x128xbf16>, vector<128x128xbf16>, vector<128x128xf32> -> vector<128x128xf32>
    %c1_17 = arith.constant 1 : index
    %c0_18 = arith.constant 0 : index
    %c0_19 = arith.constant 0 : index
    %21 = vector.load %arg4[%c1_17, %c0_18, %c0_19] : memref<5x1x128xf32, #tpu.memory_space<vmem>>, vector<1x1x128xf32>
    %22 = vector.shape_cast %21 : vector<1x1x128xf32> to vector<1x128xf32>
    %23 = vector.broadcast %22 : vector<1x128xf32> to vector<128x128xf32>
    %24 = arith.addf %20, %23 : vector<128x128xf32>
    %25 = arith.truncf %24 : vector<128x128xf32> to vector<128x128xbf16>
    %c0_20 = arith.constant 0 : index
    %c0_21 = arith.constant 0 : index
    %c0_22 = arith.constant 0 : index
    %26 = vector.load %arg2[%c0_20, %c0_21, %c0_22] : memref<2x8x128xbf16, #tpu.memory_space<vmem>>, vector<1x8x128xbf16>
    %27 = vector.shape_cast %26 : vector<1x8x128xbf16> to vector<8x128xbf16>
    %cst_23 = arith.constant dense<0.000000e+00> : vector<8x128xf32>
    %28 = tpu.matmul %27, %25, %cst_23 {dimension_numbers = #tpu.dot_dimension_numbers<[1], [0], [0], [1], [0, 0, 1, 1], [], []>} : vector<8x128xbf16>, vector<128x128xbf16>, vector<8x128xf32> -> vector<8x128xf32>
    %c1_24 = arith.constant 1 : index
    %c0_25 = arith.constant 0 : index
    %c0_26 = arith.constant 0 : index
    %29 = vector.load %arg0[%c1_24, %c0_25, %c0_26] : memref<2x128x128xbf16, #tpu.memory_space<vmem>>, vector<1x128x128xbf16>
    %30 = vector.shape_cast %29 : vector<1x128x128xbf16> to vector<128x128xbf16>
    %c1_27 = arith.constant 1 : index
    %c0_28 = arith.constant 0 : index
    %c0_29 = arith.constant 0 : index
    %31 = vector.load %arg1[%c1_27, %c0_28, %c0_29] : memref<2x128x128xbf16, #tpu.memory_space<vmem>>, vector<1x128x128xbf16>
    %32 = vector.shape_cast %31 : vector<1x128x128xbf16> to vector<128x128xbf16>
    %cst_30 = arith.constant dense<0.000000e+00> : vector<128x128xf32>
    %33 = tpu.matmul %30, %32, %cst_30 {dimension_numbers = #tpu.dot_dimension_numbers<[1], [0], [0], [1], [0, 0, 1, 1], [], []>} : vector<128x128xbf16>, vector<128x128xbf16>, vector<128x128xf32> -> vector<128x128xf32>
    %34 = arith.truncf %33 : vector<128x128xf32> to vector<128x128xbf16>
    %c0_31 = arith.constant 0 : index
    %c0_32 = arith.constant 0 : index
    %c0_33 = arith.constant 0 : index
    %35 = vector.load %arg3[%c0_31, %c0_32, %c0_33] : memref<5x128x128xbf16, #tpu.memory_space<vmem>>, vector<1x128x128xbf16>
    %36 = vector.shape_cast %35 : vector<1x128x128xbf16> to vector<128x128xbf16>
    %cst_34 = arith.constant dense<0.000000e+00> : vector<128x128xf32>
    %37 = tpu.matmul %34, %36, %cst_34 {dimension_numbers = #tpu.dot_dimension_numbers<[1], [0], [0], [1], [0, 0, 1, 1], [], []>} : vector<128x128xbf16>, vector<128x128xbf16>, vector<128x128xf32> -> vector<128x128xf32>
    %c0_35 = arith.constant 0 : index
    %c0_36 = arith.constant 0 : index
    %c0_37 = arith.constant 0 : index
    %38 = vector.load %arg4[%c0_35, %c0_36, %c0_37] : memref<5x1x128xf32, #tpu.memory_space<vmem>>, vector<1x1x128xf32>
    %39 = vector.shape_cast %38 : vector<1x1x128xf32> to vector<1x128xf32>
    %40 = vector.broadcast %39 : vector<1x128xf32> to vector<128x128xf32>
    %41 = arith.addf %37, %40 : vector<128x128xf32>
    %cst_38 = arith.constant 0.000000e+00 : f32
    %42 = vector.broadcast %cst_38 : f32 to vector<128x128xf32>
    %43 = arith.maximumf %41, %42 : vector<128x128xf32>
    %44 = arith.truncf %43 : vector<128x128xf32> to vector<128x128xbf16>
    %cst_39 = arith.constant dense<0.000000e+00> : vector<128x128xf32>
    %45 = tpu.matmul %30, %44, %cst_39 {dimension_numbers = #tpu.dot_dimension_numbers<[1], [0], [0], [1], [0, 0, 1, 1], [], []>} : vector<128x128xbf16>, vector<128x128xbf16>, vector<128x128xf32> -> vector<128x128xf32>
    %46 = arith.truncf %45 : vector<128x128xf32> to vector<128x128xbf16>
    %c1_40 = arith.constant 1 : index
    %c0_41 = arith.constant 0 : index
    %c0_42 = arith.constant 0 : index
    %47 = vector.load %arg3[%c1_40, %c0_41, %c0_42] : memref<5x128x128xbf16, #tpu.memory_space<vmem>>, vector<1x128x128xbf16>
    %48 = vector.shape_cast %47 : vector<1x128x128xbf16> to vector<128x128xbf16>
    %cst_43 = arith.constant dense<0.000000e+00> : vector<128x128xf32>
    %49 = tpu.matmul %46, %48, %cst_43 {dimension_numbers = #tpu.dot_dimension_numbers<[1], [0], [0], [1], [0, 0, 1, 1], [], []>} : vector<128x128xbf16>, vector<128x128xbf16>, vector<128x128xf32> -> vector<128x128xf32>
    %c1_44 = arith.constant 1 : index
    %c0_45 = arith.constant 0 : index
    %c0_46 = arith.constant 0 : index
    %50 = vector.load %arg4[%c1_44, %c0_45, %c0_46] : memref<5x1x128xf32, #tpu.memory_space<vmem>>, vector<1x1x128xf32>
    %51 = vector.shape_cast %50 : vector<1x1x128xf32> to vector<1x128xf32>
    %52 = vector.broadcast %51 : vector<1x128xf32> to vector<128x128xf32>
    %53 = arith.addf %49, %52 : vector<128x128xf32>
    %54 = arith.truncf %53 : vector<128x128xf32> to vector<128x128xbf16>
    %c1_47 = arith.constant 1 : index
    %c0_48 = arith.constant 0 : index
    %c0_49 = arith.constant 0 : index
    %55 = vector.load %arg2[%c1_47, %c0_48, %c0_49] : memref<2x8x128xbf16, #tpu.memory_space<vmem>>, vector<1x8x128xbf16>
    %56 = vector.shape_cast %55 : vector<1x8x128xbf16> to vector<8x128xbf16>
    %cst_50 = arith.constant dense<0.000000e+00> : vector<8x128xf32>
    %57 = tpu.matmul %56, %54, %cst_50 {dimension_numbers = #tpu.dot_dimension_numbers<[1], [0], [0], [1], [0, 0, 1, 1], [], []>} : vector<8x128xbf16>, vector<128x128xbf16>, vector<8x128xf32> -> vector<8x128xf32>
    %58 = arith.truncf %28 : vector<8x128xf32> to vector<8x128xbf16>
    %c2 = arith.constant 2 : index
    %c0_51 = arith.constant 0 : index
    %c0_52 = arith.constant 0 : index
    %59 = vector.load %arg3[%c2, %c0_51, %c0_52] : memref<5x128x128xbf16, #tpu.memory_space<vmem>>, vector<1x128x128xbf16>
    %60 = vector.shape_cast %59 : vector<1x128x128xbf16> to vector<128x128xbf16>
    %cst_53 = arith.constant dense<0.000000e+00> : vector<8x128xf32>
    %61 = tpu.matmul %58, %60, %cst_53 {dimension_numbers = #tpu.dot_dimension_numbers<[1], [0], [0], [1], [0, 0, 1, 1], [], []>} : vector<8x128xbf16>, vector<128x128xbf16>, vector<8x128xf32> -> vector<8x128xf32>
    %c2_54 = arith.constant 2 : index
    %c0_55 = arith.constant 0 : index
    %c0_56 = arith.constant 0 : index
    %62 = vector.load %arg4[%c2_54, %c0_55, %c0_56] : memref<5x1x128xf32, #tpu.memory_space<vmem>>, vector<1x1x128xf32>
    %63 = vector.shape_cast %62 : vector<1x1x128xf32> to vector<1x128xf32>
    %64 = vector.broadcast %63 : vector<1x128xf32> to vector<8x128xf32>
    %65 = arith.addf %61, %64 : vector<8x128xf32>
    %cst_57 = arith.constant 0.000000e+00 : f32
    %66 = vector.broadcast %cst_57 : f32 to vector<8x128xf32>
    %67 = arith.maximumf %65, %66 : vector<8x128xf32>
    %68 = arith.truncf %67 : vector<8x128xf32> to vector<8x128xbf16>
    %c3 = arith.constant 3 : index
    %c0_58 = arith.constant 0 : index
    %c0_59 = arith.constant 0 : index
    %69 = vector.load %arg3[%c3, %c0_58, %c0_59] : memref<5x128x128xbf16, #tpu.memory_space<vmem>>, vector<1x128x128xbf16>
    %70 = vector.shape_cast %69 : vector<1x128x128xbf16> to vector<128x128xbf16>
    %cst_60 = arith.constant dense<0.000000e+00> : vector<8x128xf32>
    %71 = tpu.matmul %68, %70, %cst_60 {dimension_numbers = #tpu.dot_dimension_numbers<[1], [0], [0], [1], [0, 0, 1, 1], [], []>} : vector<8x128xbf16>, vector<128x128xbf16>, vector<8x128xf32> -> vector<8x128xf32>
    %c3_61 = arith.constant 3 : index
    %c0_62 = arith.constant 0 : index
    %c0_63 = arith.constant 0 : index
    %72 = vector.load %arg4[%c3_61, %c0_62, %c0_63] : memref<5x1x128xf32, #tpu.memory_space<vmem>>, vector<1x1x128xf32>
    %73 = vector.shape_cast %72 : vector<1x1x128xf32> to vector<1x128xf32>
    %74 = vector.broadcast %73 : vector<1x128xf32> to vector<8x128xf32>
    %75 = arith.addf %71, %74 : vector<8x128xf32>
    %76 = arith.negf %75 : vector<8x128xf32>
    %77 = math.exp %76 : vector<8x128xf32>
    %cst_64 = arith.constant 1.000000e+00 : f32
    %78 = vector.broadcast %cst_64 : f32 to vector<8x128xf32>
    %79 = arith.addf %78, %77 : vector<8x128xf32>
    %80 = arith.divf %78, %79 : vector<8x128xf32>
    %c0_65 = arith.constant 0 : index
    %c0_66 = arith.constant 0 : index
    %c0_67 = arith.constant 0 : index
    %81 = vector.load %arg5[%c0_65, %c0_66, %c0_67] : memref<4x8x128xf32, #tpu.memory_space<vmem>>, vector<1x8x128xf32>
    %82 = vector.shape_cast %81 : vector<1x8x128xf32> to vector<8x128xf32>
    %c1_68 = arith.constant 1 : index
    %c0_69 = arith.constant 0 : index
    %c0_70 = arith.constant 0 : index
    %83 = vector.load %arg5[%c1_68, %c0_69, %c0_70] : memref<4x8x128xf32, #tpu.memory_space<vmem>>, vector<1x8x128xf32>
    %84 = vector.shape_cast %83 : vector<1x8x128xf32> to vector<8x128xf32>
    %cst_71 = arith.constant 9.99999935E-39 : f32
    %85 = vector.broadcast %cst_71 : f32 to vector<8x128xf32>
    %86 = arith.maximumf %80, %85 : vector<8x128xf32>
    %87 = math.log %86 : vector<8x128xf32>
    %cst_72 = arith.constant -1.000000e+02 : f32
    %88 = vector.broadcast %cst_72 : f32 to vector<8x128xf32>
    %89 = arith.maximumf %87, %88 : vector<8x128xf32>
    %cst_73 = arith.constant 1.000000e+00 : f32
    %90 = vector.broadcast %cst_73 : f32 to vector<8x128xf32>
    %91 = arith.subf %90, %80 : vector<8x128xf32>
    %cst_74 = arith.constant 9.99999935E-39 : f32
    %92 = vector.broadcast %cst_74 : f32 to vector<8x128xf32>
    %93 = arith.maximumf %91, %92 : vector<8x128xf32>
    %94 = math.log %93 : vector<8x128xf32>
    %cst_75 = arith.constant -1.000000e+02 : f32
    %95 = vector.broadcast %cst_75 : f32 to vector<8x128xf32>
    %96 = arith.maximumf %94, %95 : vector<8x128xf32>
    %97 = arith.mulf %82, %89 : vector<8x128xf32>
    %cst_76 = arith.constant 1.000000e+00 : f32
    %98 = vector.broadcast %cst_76 : f32 to vector<8x128xf32>
    %99 = arith.subf %98, %82 : vector<8x128xf32>
    %100 = arith.mulf %99, %96 : vector<8x128xf32>
    %101 = arith.addf %97, %100 : vector<8x128xf32>
    %cst_77 = arith.constant 0.000000e+00 : f32
    %102 = vector.broadcast %cst_77 : f32 to vector<8x128xf32>
    %103 = arith.subf %102, %101 : vector<8x128xf32>
    %104 = arith.mulf %103, %84 : vector<8x128xf32>
    %105 = vector.shape_cast %104 : vector<8x128xf32> to vector<1x8x128xf32>
    %cst_78 = arith.constant dense<0.000000e+00> : vector<1xf32>
    %106 = vector.multi_reduction <add>, %105, %cst_78 [1, 2] : vector<1x8x128xf32> to vector<1xf32>
    %107 = vector.shape_cast %106 : vector<1xf32> to vector<1x1x1xf32>
    %108 = vector.extract %107[0, 0, 0] : f32 from vector<1x1x1xf32>
    %c4 = arith.constant 4 : index
    %c0_79 = arith.constant 0 : index
    %c0_80 = arith.constant 0 : index
    %109 = vector.load %arg3[%c4, %c0_79, %c0_80] : memref<5x128x128xbf16, #tpu.memory_space<vmem>>, vector<1x128x128xbf16>
    %110 = vector.shape_cast %109 : vector<1x128x128xbf16> to vector<128x128xbf16>
    %c4_81 = arith.constant 4 : index
    %c0_82 = arith.constant 0 : index
    %c0_83 = arith.constant 0 : index
    %111 = vector.load %arg4[%c4_81, %c0_82, %c0_83] : memref<5x1x128xf32, #tpu.memory_space<vmem>>, vector<1x1x128xf32>
    %112 = vector.shape_cast %111 : vector<1x1x128xf32> to vector<1x128xf32>
    %113 = arith.truncf %28 : vector<8x128xf32> to vector<8x128xbf16>
    %cst_84 = arith.constant dense<0.000000e+00> : vector<8x128xf32>
    %114 = tpu.matmul %113, %110, %cst_84 {dimension_numbers = #tpu.dot_dimension_numbers<[1], [0], [0], [1], [0, 0, 1, 1], [], []>} : vector<8x128xbf16>, vector<128x128xbf16>, vector<8x128xf32> -> vector<8x128xf32>
    %115 = vector.broadcast %112 : vector<1x128xf32> to vector<8x128xf32>
    %116 = arith.addf %114, %115 : vector<8x128xf32>
    %117 = arith.negf %116 : vector<8x128xf32>
    %118 = math.exp %117 : vector<8x128xf32>
    %cst_85 = arith.constant 1.000000e+00 : f32
    %119 = vector.broadcast %cst_85 : f32 to vector<8x128xf32>
    %120 = arith.addf %119, %118 : vector<8x128xf32>
    %121 = arith.divf %119, %120 : vector<8x128xf32>
    %122 = arith.truncf %57 : vector<8x128xf32> to vector<8x128xbf16>
    %cst_86 = arith.constant dense<0.000000e+00> : vector<8x128xf32>
    %123 = tpu.matmul %122, %110, %cst_86 {dimension_numbers = #tpu.dot_dimension_numbers<[1], [0], [0], [1], [0, 0, 1, 1], [], []>} : vector<8x128xbf16>, vector<128x128xbf16>, vector<8x128xf32> -> vector<8x128xf32>
    %124 = vector.broadcast %112 : vector<1x128xf32> to vector<8x128xf32>
    %125 = arith.addf %123, %124 : vector<8x128xf32>
    %126 = arith.negf %125 : vector<8x128xf32>
    %127 = math.exp %126 : vector<8x128xf32>
    %cst_87 = arith.constant 1.000000e+00 : f32
    %128 = vector.broadcast %cst_87 : f32 to vector<8x128xf32>
    %129 = arith.addf %128, %127 : vector<8x128xf32>
    %130 = arith.divf %128, %129 : vector<8x128xf32>
    %c2_88 = arith.constant 2 : index
    %c0_89 = arith.constant 0 : index
    %c0_90 = arith.constant 0 : index
    %131 = vector.load %arg5[%c2_88, %c0_89, %c0_90] : memref<4x8x128xf32, #tpu.memory_space<vmem>>, vector<1x8x128xf32>
    %132 = vector.shape_cast %131 : vector<1x8x128xf32> to vector<8x128xf32>
    %133 = arith.mulf %121, %132 : vector<8x128xf32>
    %134 = vector.shape_cast %133 : vector<8x128xf32> to vector<1x8x128xf32>
    %cst_91 = arith.constant dense<0.000000e+00> : vector<1xf32>
    %135 = vector.multi_reduction <add>, %134, %cst_91 [1, 2] : vector<1x8x128xf32> to vector<1xf32>
    %136 = vector.shape_cast %135 : vector<1xf32> to vector<1x1x1xf32>
    %137 = vector.extract %136[0, 0, 0] : f32 from vector<1x1x1xf32>
    %c3_92 = arith.constant 3 : index
    %c0_93 = arith.constant 0 : index
    %c0_94 = arith.constant 0 : index
    %138 = vector.load %arg5[%c3_92, %c0_93, %c0_94] : memref<4x8x128xf32, #tpu.memory_space<vmem>>, vector<1x8x128xf32>
    %139 = vector.shape_cast %138 : vector<1x8x128xf32> to vector<8x128xf32>
    %140 = arith.mulf %130, %139 : vector<8x128xf32>
    %141 = vector.shape_cast %140 : vector<8x128xf32> to vector<1x8x128xf32>
    %cst_95 = arith.constant dense<0.000000e+00> : vector<1xf32>
    %142 = vector.multi_reduction <add>, %141, %cst_95 [1, 2] : vector<1x8x128xf32> to vector<1xf32>
    %143 = vector.shape_cast %142 : vector<1xf32> to vector<1x1x1xf32>
    %144 = vector.extract %143[0, 0, 0] : f32 from vector<1x1x1xf32>
    %145 = arith.addf %137, %144 : f32
    %146 = math.absf %145 : f32
    %c0_96 = arith.constant 0 : index
    %c0_97 = arith.constant 0 : index
    %147 = memref.load %arg6[%c0_96, %c0_97] : memref<1x1xf32, #tpu.memory_space<smem>>
    %148 = arith.mulf %147, %146 : f32
    %149 = arith.addf %108, %148 : f32
    %150 = tpu.iota {dimensions = array<i32: 0>} : vector<8x128xi32>
    %c0_i32 = arith.constant 0 : i32
    %151 = vector.broadcast %c0_i32 : i32 to vector<8x128xi32>
    %152 = arith.cmpi eq, %150, %151 : vector<8x128xi32>
    %c1_i32 = arith.constant 1 : i32
    %153 = vector.broadcast %c1_i32 : i32 to vector<8x128xi32>
    %154 = arith.cmpi eq, %150, %153 : vector<8x128xi32>
    %155 = vector.broadcast %146 : f32 to vector<8x128xf32>
    %156 = vector.broadcast %149 : f32 to vector<8x128xf32>
    %157 = arith.select %154, %155, %156 : vector<8x128xi1>, vector<8x128xf32>
    %158 = vector.broadcast %108 : f32 to vector<8x128xf32>
    %159 = arith.select %152, %158, %157 : vector<8x128xi1>, vector<8x128xf32>
    %c0_98 = arith.constant 0 : index
    %c0_99 = arith.constant 0 : index
    %160 = vector.load %arg7[%c0_98, %c0_99] : memref<8x128xf32, #tpu.memory_space<vmem>>, vector<8x128xf32>
    tpu.vector_store %arg7[%c0_98, %c0_99], %159 {strides = array<i32>} : memref<8x128xf32, #tpu.memory_space<vmem>>, vector<8x128xf32>,
    return
  }
}

</mosaic_0001>

<llo_original>
// kernel: tpu_custom_call.1
$region0: #{tpu_custom_call.1}
  #allocation0 [shape = 'u32[]', space=smem, size = 0x4, offset = 0x4, fixed_abs, tag = 'smem constant byte address 0x4 - core index']
  #allocation1 [shape = 'u32[144,128]{1,0:T(1,128)}', space=vmem, size = 0x12000, scoped, tag = 'internal scratch']
  #allocation2 [shape = 'f32[1,1]{1,0:T(1,128)S(6)}', space=smem, size = 0x200, scoped, tag = 'scoped memory for tpu_custom_call.1']
  %s0 = inlined_call_operand.hbm [shape: bf16[2,128,128], index: 0, kind: input, shape index: {}]
  %s1 = inlined_call_operand.hbm [shape: bf16[2,128,128], index: 1, kind: input, shape index: {}]
  %s2 = inlined_call_operand.hbm [shape: bf16[2,8,128], index: 2, kind: input, shape index: {}]
  %s3 = inlined_call_operand.hbm [shape: bf16[5,128,128], index: 3, kind: input, shape index: {}]
  %s4 = inlined_call_operand.vmem [shape: f32[5,1,128], index: 4, kind: input, shape index: {}]
  %s5 = inlined_call_operand.hbm [shape: f32[4,8,128], index: 5, kind: input, shape index: {}]
  %s6 = inlined_call_operand.<no memory space> [shape: f32[1,1], index: 6, kind: input, shape index: {}]
  %s7 = inlined_call_operand.hbm [shape: f32[8,128], index: 7, kind: output, shape index: {}]
  %s8 = sld [smem:[#allocation0]]
  $region58: #{tpu_custom_call.1} parent=0
    _
  %s10 = ssub.s32 1, %s8
  %s11 = scalar_select 0, %s10, %s8
  %12 = sst [smem:[#allocation2]] %s6
  $region1: #{tpu_custom_call.1} parent=0
    #allocation3 [shape = 'u8[65536]{0}', space=vmem, size = 0x10000, scoped, tag = 'input window, operand 0, single buffered']
    #allocation4 [shape = 's32[1]{0}', space=sflag, size = 0x4, scoped, tag = 'scoped memory for tpu_custom_call.1']
    #allocation5 [shape = 's32[1]{0}', space=sflag, size = 0x4, scoped, tag = 'scoped memory for tpu_custom_call.1']
    #allocation6 [shape = 'u8[65536]{0}', space=vmem, size = 0x10000, scoped, tag = 'input window, operand 1, single buffered']
    #allocation7 [shape = 's32[1]{0}', space=sflag, size = 0x4, scoped, tag = 'scoped memory for tpu_custom_call.1']
    #allocation8 [shape = 'u8[4096]{0}', space=vmem, size = 0x1000, scoped, tag = 'input window, operand 2, single buffered']
    #allocation9 [shape = 'u8[163840]{0}', space=vmem, size = 0x28000, scoped, tag = 'input window, operand 3, single buffered']
    #allocation10 [shape = 's32[1]{0}', space=sflag, size = 0x4, scoped, tag = 'scoped memory for tpu_custom_call.1']
    #allocation11 [shape = 'u8[16384]{0}', space=vmem, size = 0x4000, scoped, tag = 'input window, operand 5, single buffered']
    #allocation12 [shape = 'u8[4096]{0}', space=vmem, size = 0x1000, scoped, tag = 'output window, operand 0, single buffered']
    %13 = vsyncpa [#allocation4], 0
    %14 = vsyncpa [#allocation7], 0
    %15 = vsyncpa [#allocation10], 0
    %16 = vsyncpa [#allocation5], 0
    // Predicated region
    $region2: #{tpu_custom_call.1} parent=1 // pred_check
      _
    $region3: #{tpu_custom_call.1} parent=1 // pred_check_branch
      %18 = sbr.rel (0) target = $region5
    $region4: #{tpu_custom_call.1} parent=1 // pred_region
      %s20 = ssub.s32 2048, 2048
      %21 = vsyncadd [#allocation4], %s20
      %s22 = sshll.u32 [#allocation3], 4
      %s23 = int_to_ptr.vmem [resolvable:$true] %s22
      %28 = dma.hbm_to_vmem [thread:$0]  %s0, 2048, %s23, [#allocation4], 64, 64, 4
    $region5: #{tpu_custom_call.1} parent=1 // pred_fallthru
      _
    // Predicated region
    $region6: #{tpu_custom_call.1} parent=1 // pred_check
      _
    $region7: #{tpu_custom_call.1} parent=1 // pred_check_branch
      %30 = sbr.rel (0) target = $region9
    $region8: #{tpu_custom_call.1} parent=1 // pred_region
      %s32 = ssub.s32 2048, 2048
      %33 = vsyncadd [#allocation7], %s32
      %s34 = sshll.u32 [#allocation6], 4
      %s35 = int_to_ptr.vmem [resolvable:$true] %s34
      %40 = dma.hbm_to_vmem [thread:$0]  %s1, 2048, %s35, [#allocation7], 64, 64, 4
    $region9: #{tpu_custom_call.1} parent=1 // pred_fallthru
      _
    // Predicated region
    $region10: #{tpu_custom_call.1} parent=1 // pred_check
      _
    $region11: #{tpu_custom_call.1} parent=1 // pred_check_branch
      %42 = sbr.rel (0) target = $region13
    $region12: #{tpu_custom_call.1} parent=1 // pred_region
      %s44 = ssub.s32 128, 128
      %45 = vsyncadd [#allocation7], %s44
      %s46 = sshll.u32 [#allocation8], 4
      %s47 = int_to_ptr.vmem [resolvable:$true] %s46
      %52 = dma.hbm_to_vmem [thread:$0]  %s2, 128, %s47, [#allocation7], 64, 64, 4
    $region13: #{tpu_custom_call.1} parent=1 // pred_fallthru
      _
    // Predicated region
    $region14: #{tpu_custom_call.1} parent=1 // pred_check
      _
    $region15: #{tpu_custom_call.1} parent=1 // pred_check_branch
      %54 = sbr.rel (0) target = $region17
    $region16: #{tpu_custom_call.1} parent=1 // pred_region
      %s56 = ssub.s32 5120, 5120
      %57 = vsyncadd [#allocation10], %s56
      %s58 = sshll.u32 [#allocation9], 4
      %s59 = int_to_ptr.vmem [resolvable:$true] %s58
      %64 = dma.hbm_to_vmem [thread:$0]  %s3, 5120, %s59, [#allocation10], 64, 64, 4
    $region17: #{tpu_custom_call.1} parent=1 // pred_fallthru
      _
    // Predicated region
    $region18: #{tpu_custom_call.1} parent=1 // pred_check
      _
    $region19: #{tpu_custom_call.1} parent=1 // pred_check_branch
      %66 = sbr.rel (0) target = $region21
    $region20: #{tpu_custom_call.1} parent=1 // pred_region
      _
    $region21: #{tpu_custom_call.1} parent=1 // pred_fallthru
      _
    // Predicated region
    $region22: #{tpu_custom_call.1} parent=1 // pred_check
      _
    $region23: #{tpu_custom_call.1} parent=1 // pred_check_branch
      %68 = sbr.rel (0) target = $region25
    $region24: #{tpu_custom_call.1} parent=1 // pred_region
      %s70 = ssub.s32 512, 512
      %71 = vsyncadd [#allocation10], %s70
      %s72 = sshll.u32 [#allocation11], 4
      %s73 = int_to_ptr.vmem [resolvable:$true] %s72
      %78 = dma.hbm_to_vmem [thread:$0]  %s5, 512, %s73, [#allocation10], 128, 128, 8
    $region25: #{tpu_custom_call.1} parent=1 // pred_fallthru
      _
    // Predicated region
    $region26: #{tpu_custom_call.1} parent=1 // pred_check
      _
    $region27: #{tpu_custom_call.1} parent=1 // pred_check_branch
      %80 = sbr.rel (0) target = $region29
    $region28: #{tpu_custom_call.1} parent=1 // pred_region
      _
    $region29: #{tpu_custom_call.1} parent=1 // pred_fallthru
      _
    // Predicated region
    $region30: #{tpu_custom_call.1} parent=1 // pred_check
      _
    $region31: #{tpu_custom_call.1} parent=1 // pred_check_branch
      %82 = sbr.rel (0) target = $region33
    $region32: #{tpu_custom_call.1} parent=1 // pred_region
      %83 = dma.done [#allocation4], 2048
    $region33: #{tpu_custom_call.1} parent=1 // pred_fallthru
      _
    // Predicated region
    $region34: #{tpu_custom_call.1} parent=1 // pred_check
      _
    $region35: #{tpu_custom_call.1} parent=1 // pred_check_branch
      %85 = sbr.rel (0) target = $region37
    $region36: #{tpu_custom_call.1} parent=1 // pred_region
      %86 = dma.done [#allocation7], 2048
    $region37: #{tpu_custom_call.1} parent=1 // pred_fallthru
      _
    // Predicated region
    $region38: #{tpu_custom_call.1} parent=1 // pred_check
      _
    $region39: #{tpu_custom_call.1} parent=1 // pred_check_branch
      %88 = sbr.rel (0) target = $region41
    $region40: #{tpu_custom_call.1} parent=1 // pred_region
      %89 = dma.done [#allocation7], 128
    $region41: #{tpu_custom_call.1} parent=1 // pred_fallthru
      _
    // Predicated region
    $region42: #{tpu_custom_call.1} parent=1 // pred_check
      _
    $region43: #{tpu_custom_call.1} parent=1 // pred_check_branch
      %91 = sbr.rel (0) target = $region45
    $region44: #{tpu_custom_call.1} parent=1 // pred_region
      %92 = dma.done [#allocation10], 5120
    $region45: #{tpu_custom_call.1} parent=1 // pred_fallthru
      _
    // Predicated region
    $region46: #{tpu_custom_call.1} parent=1 // pred_check
      _
    $region47: #{tpu_custom_call.1} parent=1 // pred_check_branch
      %94 = sbr.rel (0) target = $region49
    $region48: #{tpu_custom_call.1} parent=1 // pred_region
      %95 = dma.done [#allocation10], 512
    $region49: #{tpu_custom_call.1} parent=1 // pred_fallthru
      _
    %v97 = vld [vmem:[#allocation3] sm:$0xf]
    %v98 = vld [vmem:[#allocation3 + $0x4] sm:$0xf]
    %v99 = vld [vmem:[#allocation3 + $0x8] sm:$0xf]
    %v100 = vld [vmem:[#allocation3 + $0xc] sm:$0xf]
    %v101 = vld [vmem:[#allocation3 + $0x10] sm:$0xf]
    %v102 = vld [vmem:[#allocation3 + $0x14] sm:$0xf]
    %v103 = vld [vmem:[#allocation3 + $0x18] sm:$0xf]
    %v104 = vld [vmem:[#allocation3 + $0x1c] sm:$0xf]
    %v105 = vld [vmem:[#allocation3 + $0x20] sm:$0xf]
    %v106 = vld [vmem:[#allocation3 + $0x24] sm:$0xf]
    %v107 = vld [vmem:[#allocation3 + $0x28] sm:$0xf]
    %v108 = vld [vmem:[#allocation3 + $0x2c] sm:$0xf]
    %v109 = vld [vmem:[#allocation3 + $0x30] sm:$0xf]
    %v110 = vld [vmem:[#allocation3 + $0x34] sm:$0xf]
    %v111 = vld [vmem:[#allocation3 + $0x38] sm:$0xf]
    %v112 = vld [vmem:[#allocation3 + $0x3c] sm:$0xf]
    %v113 = vld [vmem:[#allocation6] sm:$0xf]
    %v114 = vld [vmem:[#allocation6 + $0x4] sm:$0xf]
    %v115 = vld [vmem:[#allocation6 + $0x8] sm:$0xf]
    %v116 = vld [vmem:[#allocation6 + $0xc] sm:$0xf]
    %v117 = vld [vmem:[#allocation6 + $0x10] sm:$0xf]
    %v118 = vld [vmem:[#allocation6 + $0x14] sm:$0xf]
    %v119 = vld [vmem:[#allocation6 + $0x18] sm:$0xf]
    %v120 = vld [vmem:[#allocation6 + $0x1c] sm:$0xf]
    %v121 = vld [vmem:[#allocation6 + $0x20] sm:$0xf]
    %v122 = vld [vmem:[#allocation6 + $0x24] sm:$0xf]
    %v123 = vld [vmem:[#allocation6 + $0x28] sm:$0xf]
    %v124 = vld [vmem:[#allocation6 + $0x2c] sm:$0xf]
    %v125 = vld [vmem:[#allocation6 + $0x30] sm:$0xf]
    %v126 = vld [vmem:[#allocation6 + $0x34] sm:$0xf]
    %v127 = vld [vmem:[#allocation6 + $0x38] sm:$0xf]
    %v128 = vld [vmem:[#allocation6 + $0x3c] sm:$0xf]
    %v145 = vunpack.c.l.b16 %v97
    %v146 = vunpack.c.l.b16 %v98
    %v147 = vunpack.c.l.b16 %v99
    %v148 = vunpack.c.l.b16 %v100
    %v149 = vunpack.c.l.b16 %v101
    %v150 = vunpack.c.l.b16 %v102
    %v151 = vunpack.c.l.b16 %v103
    %v152 = vunpack.c.l.b16 %v104
    %v153 = vunpack.c.l.b16 %v105
    %v154 = vunpack.c.l.b16 %v106
    %v155 = vunpack.c.l.b16 %v107
    %v156 = vunpack.c.l.b16 %v108
    %v157 = vunpack.c.l.b16 %v109
    %v158 = vunpack.c.l.b16 %v110
    %v159 = vunpack.c.l.b16 %v111
    %v160 = vunpack.c.l.b16 %v112
    %v161 = vpack.c.b16 %v146, %v145
    %v162 = vpack.c.b16 %v148, %v147
    %v163 = vpack.c.b16 %v150, %v149
    %v164 = vpack.c.b16 %v152, %v151
    %v165 = vpack.c.b16 %v154, %v153
    %v166 = vpack.c.b16 %v156, %v155
    %v167 = vpack.c.b16 %v158, %v157
    %v168 = vpack.c.b16 %v160, %v159
    %v193 = vunpack.c.l.b16 %v113
    %v194 = vunpack.c.l.b16 %v114
    %v195 = vunpack.c.l.b16 %v115
    %v196 = vunpack.c.l.b16 %v116
    %v197 = vunpack.c.l.b16 %v117
    %v198 = vunpack.c.l.b16 %v118
    %v199 = vunpack.c.l.b16 %v119
    %v200 = vunpack.c.l.b16 %v120
    %v201 = vunpack.c.l.b16 %v121
    %v202 = vunpack.c.l.b16 %v122
    %v203 = vunpack.c.l.b16 %v123
    %v204 = vunpack.c.l.b16 %v124
    %v205 = vunpack.c.l.b16 %v125
    %v206 = vunpack.c.l.b16 %v126
    %v207 = vunpack.c.l.b16 %v127
    %v208 = vunpack.c.l.b16 %v128
    %v209 = vpack.c.b16 %v194, %v193
    %v210 = vpack.c.b16 %v196, %v195
    %v211 = vpack.c.b16 %v198, %v197
    %v212 = vpack.c.b16 %v200, %v199
    %v213 = vpack.c.b16 %v202, %v201
    %v214 = vpack.c.b16 %v204, %v203
    %v215 = vpack.c.b16 %v206, %v205
    %v216 = vpack.c.b16 %v208, %v207
    %225 = vmatprep.subr.bf16.mxu0 0
    %226 = vmatpush1.bf16.msra.mxu0 %v216
    %227 = vmatprep.subr.bf16.mxu0 0
    %228 = vmatpush1.bf16.msra.mxu0 %v215
    %229 = vmatprep.subr.bf16.mxu0 0
    %230 = vmatpush1.bf16.msra.mxu0 %v214
    %231 = vmatprep.subr.bf16.mxu0 0
    %232 = vmatpush1.bf16.msra.mxu0 %v213
    %233 = vmatprep.subr.bf16.mxu0 0
    %234 = vmatpush1.bf16.msra.mxu0 %v212
    %235 = vmatprep.subr.bf16.mxu0 0
    %236 = vmatpush1.bf16.msra.mxu0 %v211
    %237 = vmatprep.subr.bf16.mxu0 0
    %238 = vmatpush1.bf16.msra.mxu0 %v210
    %239 = vmatprep.subr.bf16.mxu0 0
    %240 = vmatpush1.bf16.msra.mxu0 %v209
    %241 = vmatprep.subr.bf16.mxu0 0
    %242 = vmatpush2.bf16.msra.mxu0 0
    %243 = vmatprep.subr.bf16.mxu0 0
    %244 = vmatpush2.bf16.msra.mxu0 0
    %245 = vmatprep.subr.bf16.mxu0 0
    %246 = vmatpush2.bf16.msra.mxu0 0
    %247 = vmatprep.subr.bf16.mxu0 0
    %248 = vmatpush2.bf16.msra.mxu0 0
    %249 = vmatprep.subr.bf16.mxu0 0
    %250 = vmatpush2.bf16.msra.mxu0 0
    %251 = vmatprep.subr.bf16.mxu0 0
    %252 = vmatpush2.bf16.msra.mxu0 0
    %253 = vmatprep.subr.bf16.mxu0 0
    %254 = vmatpush2.bf16.msra.mxu0 0
    %255 = vmatprep.subr.bf16.mxu0 0
    %256 = vmatpush2.bf16.msra.mxu0 0
    %257 = vmatprep.mubr.bf16.mxu0 0
    %258 = vmatmul.mubr.bf16.gmra.mxu0 %v161
    %v259 = vpop.f32.mrf.mxu0
    %v260 = vadd.f32 0.0, %v259
    %v261 = vpop.f32.mrf.mxu0
    %v262 = vpop.f32.mrf.mxu0
    %v263 = vadd.f32 0.0, %v262
    %v264 = vpop.f32.mrf.mxu0
    %265 = vmatprep.mubr.bf16.mxu0 0
    %266 = vmatmul.mubr.bf16.gmra.mxu0 %v162
    %v267 = vpop.f32.mrf.mxu0
    %v268 = vadd.f32 0.0, %v267
    %v269 = vpop.f32.mrf.mxu0
    %v270 = vpop.f32.mrf.mxu0
    %v271 = vadd.f32 0.0, %v270
    %v272 = vpop.f32.mrf.mxu0
    %273 = vmatprep.mubr.bf16.mxu0 0
    %274 = vmatmul.mubr.bf16.gmra.mxu0 %v163
    %v275 = vpop.f32.mrf.mxu0
    %v276 = vadd.f32 0.0, %v275
    %v277 = vpop.f32.mrf.mxu0
    %v278 = vpop.f32.mrf.mxu0
    %v279 = vadd.f32 0.0, %v278
    %v280 = vpop.f32.mrf.mxu0
    %281 = vmatprep.mubr.bf16.mxu0 0
    %282 = vmatmul.mubr.bf16.gmra.mxu0 %v164
    %v283 = vpop.f32.mrf.mxu0
    %v284 = vadd.f32 0.0, %v283
    %v285 = vpop.f32.mrf.mxu0
    %v286 = vpop.f32.mrf.mxu0
    %v287 = vadd.f32 0.0, %v286
    %v288 = vpop.f32.mrf.mxu0
    %289 = vmatprep.mubr.bf16.mxu0 0
    %290 = vmatmul.mubr.bf16.gmra.mxu0 %v165
    %v291 = vpop.f32.mrf.mxu0
    %v292 = vadd.f32 0.0, %v291
    %v293 = vpop.f32.mrf.mxu0
    %v294 = vpop.f32.mrf.mxu0
    %v295 = vadd.f32 0.0, %v294
    %v296 = vpop.f32.mrf.mxu0
    %297 = vmatprep.mubr.bf16.mxu0 0
    %298 = vmatmul.mubr.bf16.gmra.mxu0 %v166
    %v299 = vpop.f32.mrf.mxu0
    %v300 = vadd.f32 0.0, %v299
    %v301 = vpop.f32.mrf.mxu0
    %v302 = vpop.f32.mrf.mxu0
    %v303 = vadd.f32 0.0, %v302
    %v304 = vpop.f32.mrf.mxu0
    %305 = vmatprep.mubr.bf16.mxu0 0
    %306 = vmatmul.mubr.bf16.gmra.mxu0 %v167
    %v307 = vpop.f32.mrf.mxu0
    %v308 = vadd.f32 0.0, %v307
    %v309 = vpop.f32.mrf.mxu0
    %v310 = vpop.f32.mrf.mxu0
    %v311 = vadd.f32 0.0, %v310
    %v312 = vpop.f32.mrf.mxu0
    %313 = vmatprep.mubr.bf16.mxu0 0
    %314 = vmatmul.mubr.bf16.gmra.mxu0 %v168
    %v315 = vpop.f32.mrf.mxu0
    %v316 = vadd.f32 0.0, %v315
    %v317 = vpop.f32.mrf.mxu0
    %v318 = vpop.f32.mrf.mxu0
    %v319 = vadd.f32 0.0, %v318
    %v320 = vpop.f32.mrf.mxu0
    %321 = vdwg.mxu0
    %v322 = vpack.c.bf16 %v263, %v260
    %v323 = vpack.c.bf16 %v271, %v268
    %v324 = vpack.c.bf16 %v279, %v276
    %v325 = vpack.c.bf16 %v287, %v284
    %v326 = vpack.c.bf16 %v295, %v292
    %v327 = vpack.c.bf16 %v303, %v300
    %v328 = vpack.c.bf16 %v311, %v308
    %v329 = vpack.c.bf16 %v319, %v316
    %v330 = vld [vmem:[#allocation9] sm:$0xf]
    %v331 = vld [vmem:[#allocation9 + $0x4] sm:$0xf]
    %v332 = vld [vmem:[#allocation9 + $0x8] sm:$0xf]
    %v333 = vld [vmem:[#allocation9 + $0xc] sm:$0xf]
    %v334 = vld [vmem:[#allocation9 + $0x10] sm:$0xf]
    %v335 = vld [vmem:[#allocation9 + $0x14] sm:$0xf]
    %v336 = vld [vmem:[#allocation9 + $0x18] sm:$0xf]
    %v337 = vld [vmem:[#allocation9 + $0x1c] sm:$0xf]
    %v338 = vld [vmem:[#allocation9 + $0x20] sm:$0xf]
    %v339 = vld [vmem:[#allocation9 + $0x24] sm:$0xf]
    %v340 = vld [vmem:[#allocation9 + $0x28] sm:$0xf]
    %v341 = vld [vmem:[#allocation9 + $0x2c] sm:$0xf]
    %v342 = vld [vmem:[#allocation9 + $0x30] sm:$0xf]
    %v343 = vld [vmem:[#allocation9 + $0x34] sm:$0xf]
    %v344 = vld [vmem:[#allocation9 + $0x38] sm:$0xf]
    %v345 = vld [vmem:[#allocation9 + $0x3c] sm:$0xf]
    %v346 = vld [vmem:[%s4] sm:$0x1]
    %v348 = vlaneseq
    %v349 = vshrl.u32 %v348, 7
    %v350 = vsub.s32 0, %v349
    %v351 = vrot.slane %v346, %v350
    %v369 = vunpack.c.l.b16 %v330
    %v370 = vunpack.c.l.b16 %v331
    %v371 = vunpack.c.l.b16 %v332
    %v372 = vunpack.c.l.b16 %v333
    %v373 = vunpack.c.l.b16 %v334
    %v374 = vunpack.c.l.b16 %v335
    %v375 = vunpack.c.l.b16 %v336
    %v376 = vunpack.c.l.b16 %v337
    %v377 = vunpack.c.l.b16 %v338
    %v378 = vunpack.c.l.b16 %v339
    %v379 = vunpack.c.l.b16 %v340
    %v380 = vunpack.c.l.b16 %v341
    %v381 = vunpack.c.l.b16 %v342
    %v382 = vunpack.c.l.b16 %v343
    %v383 = vunpack.c.l.b16 %v344
    %v384 = vunpack.c.l.b16 %v345
    %v385 = vpack.c.b16 %v370, %v369
    %v386 = vpack.c.b16 %v372, %v371
    %v387 = vpack.c.b16 %v374, %v373
    %v388 = vpack.c.b16 %v376, %v375
    %v389 = vpack.c.b16 %v378, %v377
    %v390 = vpack.c.b16 %v380, %v379
    %v391 = vpack.c.b16 %v382, %v381
    %v392 = vpack.c.b16 %v384, %v383
    %401 = vmatprep.subr.bf16.mxu0 0
    %402 = vmatpush1.bf16.msra.mxu0 %v392
    %403 = vmatprep.subr.bf16.mxu0 0
    %404 = vmatpush1.bf16.msra.mxu0 %v391
    %405 = vmatprep.subr.bf16.mxu0 0
    %406 = vmatpush1.bf16.msra.mxu0 %v390
    %407 = vmatprep.subr.bf16.mxu0 0
    %408 = vmatpush1.bf16.msra.mxu0 %v389
    %409 = vmatprep.subr.bf16.mxu0 0
    %410 = vmatpush1.bf16.msra.mxu0 %v388
    %411 = vmatprep.subr.bf16.mxu0 0
    %412 = vmatpush1.bf16.msra.mxu0 %v387
    %413 = vmatprep.subr.bf16.mxu0 0
    %414 = vmatpush1.bf16.msra.mxu0 %v386
    %415 = vmatprep.subr.bf16.mxu0 0
    %416 = vmatpush1.bf16.msra.mxu0 %v385
    %417 = vmatprep.subr.bf16.mxu0 0
    %418 = vmatpush2.bf16.msra.mxu0 0
    %419 = vmatprep.subr.bf16.mxu0 0
    %420 = vmatpush2.bf16.msra.mxu0 0
    %421 = vmatprep.subr.bf16.mxu0 0
    %422 = vmatpush2.bf16.msra.mxu0 0
    %423 = vmatprep.subr.bf16.mxu0 0
    %424 = vmatpush2.bf16.msra.mxu0 0
    %425 = vmatprep.subr.bf16.mxu0 0
    %426 = vmatpush2.bf16.msra.mxu0 0
    %427 = vmatprep.subr.bf16.mxu0 0
    %428 = vmatpush2.bf16.msra.mxu0 0
    %429 = vmatprep.subr.bf16.mxu0 0
    %430 = vmatpush2.bf16.msra.mxu0 0
    %431 = vmatprep.subr.bf16.mxu0 0
    %432 = vmatpush2.bf16.msra.mxu0 0
    %433 = vmatprep.mubr.bf16.mxu0 0
    %434 = vmatmul.mubr.bf16.gmra.mxu0 %v322
    %v435 = vpop.f32.mrf.mxu0
    %v436 = vadd.f32 %v351, %v435
    %v437 = vpop.f32.mrf.mxu0
    %v438 = vpop.f32.mrf.mxu0
    %v439 = vadd.f32 %v351, %v438
    %v440 = vpop.f32.mrf.mxu0
    %441 = vmatprep.mubr.bf16.mxu0 0
    %442 = vmatmul.mubr.bf16.gmra.mxu0 %v323
    %v443 = vpop.f32.mrf.mxu0
    %v444 = vadd.f32 %v351, %v443
    %v445 = vpop.f32.mrf.mxu0
    %v446 = vpop.f32.mrf.mxu0
    %v447 = vadd.f32 %v351, %v446
    %v448 = vpop.f32.mrf.mxu0
    %449 = vmatprep.mubr.bf16.mxu0 0
    %450 = vmatmul.mubr.bf16.gmra.mxu0 %v324
    %v451 = vpop.f32.mrf.mxu0
    %v452 = vadd.f32 %v351, %v451
    %v453 = vpop.f32.mrf.mxu0
    %v454 = vpop.f32.mrf.mxu0
    %v455 = vadd.f32 %v351, %v454
    %v456 = vpop.f32.mrf.mxu0
    %457 = vmatprep.mubr.bf16.mxu0 0
    %458 = vmatmul.mubr.bf16.gmra.mxu0 %v325
    %v459 = vpop.f32.mrf.mxu0
    %v460 = vadd.f32 %v351, %v459
    %v461 = vpop.f32.mrf.mxu0
    %v462 = vpop.f32.mrf.mxu0
    %v463 = vadd.f32 %v351, %v462
    %v464 = vpop.f32.mrf.mxu0
    %465 = vmatprep.mubr.bf16.mxu0 0
    %466 = vmatmul.mubr.bf16.gmra.mxu0 %v326
    %v467 = vpop.f32.mrf.mxu0
    %v468 = vadd.f32 %v351, %v467
    %v469 = vpop.f32.mrf.mxu0
    %v470 = vpop.f32.mrf.mxu0
    %v471 = vadd.f32 %v351, %v470
    %v472 = vpop.f32.mrf.mxu0
    %473 = vmatprep.mubr.bf16.mxu0 0
    %474 = vmatmul.mubr.bf16.gmra.mxu0 %v327
    %v475 = vpop.f32.mrf.mxu0
    %v476 = vadd.f32 %v351, %v475
    %v477 = vpop.f32.mrf.mxu0
    %v478 = vpop.f32.mrf.mxu0
    %v479 = vadd.f32 %v351, %v478
    %v480 = vpop.f32.mrf.mxu0
    %481 = vmatprep.mubr.bf16.mxu0 0
    %482 = vmatmul.mubr.bf16.gmra.mxu0 %v328
    %v483 = vpop.f32.mrf.mxu0
    %v484 = vadd.f32 %v351, %v483
    %v485 = vpop.f32.mrf.mxu0
    %v486 = vpop.f32.mrf.mxu0
    %v487 = vadd.f32 %v351, %v486
    %v488 = vpop.f32.mrf.mxu0
    %489 = vmatprep.mubr.bf16.mxu0 0
    %490 = vmatmul.mubr.bf16.gmra.mxu0 %v329
    %v491 = vpop.f32.mrf.mxu0
    %v492 = vadd.f32 %v351, %v491
    %v493 = vpop.f32.mrf.mxu0
    %v494 = vpop.f32.mrf.mxu0
    %v495 = vadd.f32 %v351, %v494
    %v496 = vpop.f32.mrf.mxu0
    %497 = vdwg.mxu0
    %v498 = vmax.f32 %v436, 0.0
    %v499 = vmax.f32 %v439, 0.0
    %v500 = vmax.f32 %v444, 0.0
    %v501 = vmax.f32 %v447, 0.0
    %v502 = vmax.f32 %v452, 0.0
    %v503 = vmax.f32 %v455, 0.0
    %v504 = vmax.f32 %v460, 0.0
    %v505 = vmax.f32 %v463, 0.0
    %v506 = vmax.f32 %v468, 0.0
    %v507 = vmax.f32 %v471, 0.0
    %v508 = vmax.f32 %v476, 0.0
    %v509 = vmax.f32 %v479, 0.0
    %v510 = vmax.f32 %v484, 0.0
    %v511 = vmax.f32 %v487, 0.0
    %v512 = vmax.f32 %v492, 0.0
    %v513 = vmax.f32 %v495, 0.0
    %v514 = vpack.c.bf16 %v499, %v498
    %v515 = vpack.c.bf16 %v501, %v500
    %v516 = vpack.c.bf16 %v503, %v502
    %v517 = vpack.c.bf16 %v505, %v504
    %v518 = vpack.c.bf16 %v507, %v506
    %v519 = vpack.c.bf16 %v509, %v508
    %v520 = vpack.c.bf16 %v511, %v510
    %v521 = vpack.c.bf16 %v513, %v512
    %522 = vmatprep.subr.bf16.mxu0 0
    %523 = vmatpush1.bf16.msra.mxu0 %v521
    %524 = vmatprep.subr.bf16.mxu0 0
    %525 = vmatpush1.bf16.msra.mxu0 %v520
    %526 = vmatprep.subr.bf16.mxu0 0
    %527 = vmatpush1.bf16.msra.mxu0 %v519
    %528 = vmatprep.subr.bf16.mxu0 0
    %529 = vmatpush1.bf16.msra.mxu0 %v518
    %530 = vmatprep.subr.bf16.mxu0 0
    %531 = vmatpush1.bf16.msra.mxu0 %v517
    %532 = vmatprep.subr.bf16.mxu0 0
    %533 = vmatpush1.bf16.msra.mxu0 %v516
    %534 = vmatprep.subr.bf16.mxu0 0
    %535 = vmatpush1.bf16.msra.mxu0 %v515
    %536 = vmatprep.subr.bf16.mxu0 0
    %537 = vmatpush1.bf16.msra.mxu0 %v514
    %538 = vmatprep.subr.bf16.mxu0 0
    %539 = vmatpush2.bf16.msra.mxu0 0
    %540 = vmatprep.subr.bf16.mxu0 0
    %541 = vmatpush2.bf16.msra.mxu0 0
    %542 = vmatprep.subr.bf16.mxu0 0
    %543 = vmatpush2.bf16.msra.mxu0 0
    %544 = vmatprep.subr.bf16.mxu0 0
    %545 = vmatpush2.bf16.msra.mxu0 0
    %546 = vmatprep.subr.bf16.mxu0 0
    %547 = vmatpush2.bf16.msra.mxu0 0
    %548 = vmatprep.subr.bf16.mxu0 0
    %549 = vmatpush2.bf16.msra.mxu0 0
    %550 = vmatprep.subr.bf16.mxu0 0
    %551 = vmatpush2.bf16.msra.mxu0 0
    %552 = vmatprep.subr.bf16.mxu0 0
    %553 = vmatpush2.bf16.msra.mxu0 0
    %554 = vmatprep.mubr.bf16.mxu0 0
    %555 = vmatmul.mubr.bf16.gmra.mxu0 %v161
    %v556 = vpop.f32.mrf.mxu0
    %v557 = vadd.f32 0.0, %v556
    %v558 = vpop.f32.mrf.mxu0
    %v559 = vpop.f32.mrf.mxu0
    %v560 = vadd.f32 0.0, %v559
    %v561 = vpop.f32.mrf.mxu0
    %562 = vmatprep.mubr.bf16.mxu0 0
    %563 = vmatmul.mubr.bf16.gmra.mxu0 %v162
    %v564 = vpop.f32.mrf.mxu0
    %v565 = vadd.f32 0.0, %v564
    %v566 = vpop.f32.mrf.mxu0
    %v567 = vpop.f32.mrf.mxu0
    %v568 = vadd.f32 0.0, %v567
    %v569 = vpop.f32.mrf.mxu0
    %570 = vmatprep.mubr.bf16.mxu0 0
    %571 = vmatmul.mubr.bf16.gmra.mxu0 %v163
    %v572 = vpop.f32.mrf.mxu0
    %v573 = vadd.f32 0.0, %v572
    %v574 = vpop.f32.mrf.mxu0
    %v575 = vpop.f32.mrf.mxu0
    %v576 = vadd.f32 0.0, %v575
    %v577 = vpop.f32.mrf.mxu0
    %578 = vmatprep.mubr.bf16.mxu0 0
    %579 = vmatmul.mubr.bf16.gmra.mxu0 %v164
    %v580 = vpop.f32.mrf.mxu0
    %v581 = vadd.f32 0.0, %v580
    %v582 = vpop.f32.mrf.mxu0
    %v583 = vpop.f32.mrf.mxu0
    %v584 = vadd.f32 0.0, %v583
    %v585 = vpop.f32.mrf.mxu0
    %586 = vmatprep.mubr.bf16.mxu0 0
    %587 = vmatmul.mubr.bf16.gmra.mxu0 %v165
    %v588 = vpop.f32.mrf.mxu0
    %v589 = vadd.f32 0.0, %v588
    %v590 = vpop.f32.mrf.mxu0
    %v591 = vpop.f32.mrf.mxu0
    %v592 = vadd.f32 0.0, %v591
    %v593 = vpop.f32.mrf.mxu0
    %594 = vmatprep.mubr.bf16.mxu0 0
    %595 = vmatmul.mubr.bf16.gmra.mxu0 %v166
    %v596 = vpop.f32.mrf.mxu0
    %v597 = vadd.f32 0.0, %v596
    %v598 = vpop.f32.mrf.mxu0
    %v599 = vpop.f32.mrf.mxu0
    %v600 = vadd.f32 0.0, %v599
    %v601 = vpop.f32.mrf.mxu0
    %602 = vmatprep.mubr.bf16.mxu0 0
    %603 = vmatmul.mubr.bf16.gmra.mxu0 %v167
    %v604 = vpop.f32.mrf.mxu0
    %v605 = vadd.f32 0.0, %v604
    %v606 = vpop.f32.mrf.mxu0
    %v607 = vpop.f32.mrf.mxu0
    %v608 = vadd.f32 0.0, %v607
    %v609 = vpop.f32.mrf.mxu0
    %610 = vmatprep.mubr.bf16.mxu0 0
    %611 = vmatmul.mubr.bf16.gmra.mxu0 %v168
    %v612 = vpop.f32.mrf.mxu0
    %v613 = vadd.f32 0.0, %v612
    %v614 = vpop.f32.mrf.mxu0
    %v615 = vpop.f32.mrf.mxu0
    %v616 = vadd.f32 0.0, %v615
    %v617 = vpop.f32.mrf.mxu0
    %618 = vdwg.mxu0
    %v619 = vpack.c.bf16 %v560, %v557
    %v620 = vpack.c.bf16 %v568, %v565
    %v621 = vpack.c.bf16 %v576, %v573
    %v622 = vpack.c.bf16 %v584, %v581
    %v623 = vpack.c.bf16 %v592, %v589
    %v624 = vpack.c.bf16 %v600, %v597
    %v625 = vpack.c.bf16 %v608, %v605
    %v626 = vpack.c.bf16 %v616, %v613
    %s627 = scalar_lea.vmem [#allocation9], 64
    %v628 = vld [vmem:[%s627] sm:$0xf]
    %v629 = vld [vmem:[%s627 + $0x4] sm:$0xf]
    %v630 = vld [vmem:[%s627 + $0x8] sm:$0xf]
    %v631 = vld [vmem:[%s627 + $0xc] sm:$0xf]
    %v632 = vld [vmem:[%s627 + $0x10] sm:$0xf]
    %v633 = vld [vmem:[%s627 + $0x14] sm:$0xf]
    %v634 = vld [vmem:[%s627 + $0x18] sm:$0xf]
    %v635 = vld [vmem:[%s627 + $0x1c] sm:$0xf]
    %v636 = vld [vmem:[%s627 + $0x20] sm:$0xf]
    %v637 = vld [vmem:[%s627 + $0x24] sm:$0xf]
    %v638 = vld [vmem:[%s627 + $0x28] sm:$0xf]
    %v639 = vld [vmem:[%s627 + $0x2c] sm:$0xf]
    %v640 = vld [vmem:[%s627 + $0x30] sm:$0xf]
    %v641 = vld [vmem:[%s627 + $0x34] sm:$0xf]
    %v642 = vld [vmem:[%s627 + $0x38] sm:$0xf]
    %v643 = vld [vmem:[%s627 + $0x3c] sm:$0xf]
    %s644 = scalar_lea.vmem %s4, 1
    %v645 = vld [vmem:[%s644] sm:$0x1]
    %v647 = vlaneseq
    %v648 = vshrl.u32 %v647, 7
    %v649 = vsub.s32 0, %v648
    %v650 = vrot.slane %v645, %v649
    %v668 = vunpack.c.l.b16 %v628
    %v669 = vunpack.c.l.b16 %v629
    %v670 = vunpack.c.l.b16 %v630
    %v671 = vunpack.c.l.b16 %v631
    %v672 = vunpack.c.l.b16 %v632
    %v673 = vunpack.c.l.b16 %v633
    %v674 = vunpack.c.l.b16 %v634
    %v675 = vunpack.c.l.b16 %v635
    %v676 = vunpack.c.l.b16 %v636
    %v677 = vunpack.c.l.b16 %v637
    %v678 = vunpack.c.l.b16 %v638
    %v679 = vunpack.c.l.b16 %v639
    %v680 = vunpack.c.l.b16 %v640
    %v681 = vunpack.c.l.b16 %v641
    %v682 = vunpack.c.l.b16 %v642
    %v683 = vunpack.c.l.b16 %v643
    %v684 = vpack.c.b16 %v669, %v668
    %v685 = vpack.c.b16 %v671, %v670
    %v686 = vpack.c.b16 %v673, %v672
    %v687 = vpack.c.b16 %v675, %v674
    %v688 = vpack.c.b16 %v677, %v676
    %v689 = vpack.c.b16 %v679, %v678
    %v690 = vpack.c.b16 %v681, %v680
    %v691 = vpack.c.b16 %v683, %v682
    %700 = vmatprep.subr.bf16.mxu0 0
    %701 = vmatpush1.bf16.msra.mxu0 %v691
    %702 = vmatprep.subr.bf16.mxu0 0
    %703 = vmatpush1.bf16.msra.mxu0 %v690
    %704 = vmatprep.subr.bf16.mxu0 0
    %705 = vmatpush1.bf16.msra.mxu0 %v689
    %706 = vmatprep.subr.bf16.mxu0 0
    %707 = vmatpush1.bf16.msra.mxu0 %v688
    %708 = vmatprep.subr.bf16.mxu0 0
    %709 = vmatpush1.bf16.msra.mxu0 %v687
    %710 = vmatprep.subr.bf16.mxu0 0
    %711 = vmatpush1.bf16.msra.mxu0 %v686
    %712 = vmatprep.subr.bf16.mxu0 0
    %713 = vmatpush1.bf16.msra.mxu0 %v685
    %714 = vmatprep.subr.bf16.mxu0 0
    %715 = vmatpush1.bf16.msra.mxu0 %v684
    %716 = vmatprep.subr.bf16.mxu0 0
    %717 = vmatpush2.bf16.msra.mxu0 0
    %718 = vmatprep.subr.bf16.mxu0 0
    %719 = vmatpush2.bf16.msra.mxu0 0
    %720 = vmatprep.subr.bf16.mxu0 0
    %721 = vmatpush2.bf16.msra.mxu0 0
    %722 = vmatprep.subr.bf16.mxu0 0
    %723 = vmatpush2.bf16.msra.mxu0 0
    %724 = vmatprep.subr.bf16.mxu0 0
    %725 = vmatpush2.bf16.msra.mxu0 0
    %726 = vmatprep.subr.bf16.mxu0 0
    %727 = vmatpush2.bf16.msra.mxu0 0
    %728 = vmatprep.subr.bf16.mxu0 0
    %729 = vmatpush2.bf16.msra.mxu0 0
    %730 = vmatprep.subr.bf16.mxu0 0
    %731 = vmatpush2.bf16.msra.mxu0 0
    %732 = vmatprep.mubr.bf16.mxu0 0
    %733 = vmatmul.mubr.bf16.gmra.mxu0 %v619
    %v734 = vpop.f32.mrf.mxu0
    %v735 = vadd.f32 %v650, %v734
    %v736 = vpop.f32.mrf.mxu0
    %v737 = vpop.f32.mrf.mxu0
    %v738 = vadd.f32 %v650, %v737
    %v739 = vpop.f32.mrf.mxu0
    %740 = vmatprep.mubr.bf16.mxu0 0
    %741 = vmatmul.mubr.bf16.gmra.mxu0 %v620
    %v742 = vpop.f32.mrf.mxu0
    %v743 = vadd.f32 %v650, %v742
    %v744 = vpop.f32.mrf.mxu0
    %v745 = vpop.f32.mrf.mxu0
    %v746 = vadd.f32 %v650, %v745
    %v747 = vpop.f32.mrf.mxu0
    %748 = vmatprep.mubr.bf16.mxu0 0
    %749 = vmatmul.mubr.bf16.gmra.mxu0 %v621
    %v750 = vpop.f32.mrf.mxu0
    %v751 = vadd.f32 %v650, %v750
    %v752 = vpop.f32.mrf.mxu0
    %v753 = vpop.f32.mrf.mxu0
    %v754 = vadd.f32 %v650, %v753
    %v755 = vpop.f32.mrf.mxu0
    %756 = vmatprep.mubr.bf16.mxu0 0
    %757 = vmatmul.mubr.bf16.gmra.mxu0 %v622
    %v758 = vpop.f32.mrf.mxu0
    %v759 = vadd.f32 %v650, %v758
    %v760 = vpop.f32.mrf.mxu0
    %v761 = vpop.f32.mrf.mxu0
    %v762 = vadd.f32 %v650, %v761
    %v763 = vpop.f32.mrf.mxu0
    %764 = vmatprep.mubr.bf16.mxu0 0
    %765 = vmatmul.mubr.bf16.gmra.mxu0 %v623
    %v766 = vpop.f32.mrf.mxu0
    %v767 = vadd.f32 %v650, %v766
    %v768 = vpop.f32.mrf.mxu0
    %v769 = vpop.f32.mrf.mxu0
    %v770 = vadd.f32 %v650, %v769
    %v771 = vpop.f32.mrf.mxu0
    %772 = vmatprep.mubr.bf16.mxu0 0
    %773 = vmatmul.mubr.bf16.gmra.mxu0 %v624
    %v774 = vpop.f32.mrf.mxu0
    %v775 = vadd.f32 %v650, %v774
    %v776 = vpop.f32.mrf.mxu0
    %v777 = vpop.f32.mrf.mxu0
    %v778 = vadd.f32 %v650, %v777
    %v779 = vpop.f32.mrf.mxu0
    %780 = vmatprep.mubr.bf16.mxu0 0
    %781 = vmatmul.mubr.bf16.gmra.mxu0 %v625
    %v782 = vpop.f32.mrf.mxu0
    %v783 = vadd.f32 %v650, %v782
    %v784 = vpop.f32.mrf.mxu0
    %v785 = vpop.f32.mrf.mxu0
    %v786 = vadd.f32 %v650, %v785
    %v787 = vpop.f32.mrf.mxu0
    %788 = vmatprep.mubr.bf16.mxu0 0
    %789 = vmatmul.mubr.bf16.gmra.mxu0 %v626
    %v790 = vpop.f32.mrf.mxu0
    %v791 = vadd.f32 %v650, %v790
    %v792 = vpop.f32.mrf.mxu0
    %v793 = vpop.f32.mrf.mxu0
    %v794 = vadd.f32 %v650, %v793
    %v795 = vpop.f32.mrf.mxu0
    %796 = vdwg.mxu0
    %v797 = vpack.c.bf16 %v738, %v735
    %v798 = vpack.c.bf16 %v746, %v743
    %v799 = vpack.c.bf16 %v754, %v751
    %v800 = vpack.c.bf16 %v762, %v759
    %v801 = vpack.c.bf16 %v770, %v767
    %v802 = vpack.c.bf16 %v778, %v775
    %v803 = vpack.c.bf16 %v786, %v783
    %v804 = vpack.c.bf16 %v794, %v791
    %v805 = vld [vmem:[#allocation8] sm:$0xf]
    %806 = vmatprep.subr.bf16.mxu0 0
    %807 = vmatpush1.bf16.msra.mxu0 %v804
    %808 = vmatprep.subr.bf16.mxu0 0
    %809 = vmatpush1.bf16.msra.mxu0 %v803
    %810 = vmatprep.subr.bf16.mxu0 0
    %811 = vmatpush1.bf16.msra.mxu0 %v802
    %812 = vmatprep.subr.bf16.mxu0 0
    %813 = vmatpush1.bf16.msra.mxu0 %v801
    %814 = vmatprep.subr.bf16.mxu0 0
    %815 = vmatpush1.bf16.msra.mxu0 %v800
    %816 = vmatprep.subr.bf16.mxu0 0
    %817 = vmatpush1.bf16.msra.mxu0 %v799
    %818 = vmatprep.subr.bf16.mxu0 0
    %819 = vmatpush1.bf16.msra.mxu0 %v798
    %820 = vmatprep.subr.bf16.mxu0 0
    %821 = vmatpush1.bf16.msra.mxu0 %v797
    %822 = vmatprep.subr.bf16.mxu0 0
    %823 = vmatpush2.bf16.msra.mxu0 0
    %824 = vmatprep.subr.bf16.mxu0 0
    %825 = vmatpush2.bf16.msra.mxu0 0
    %826 = vmatprep.subr.bf16.mxu0 0
    %827 = vmatpush2.bf16.msra.mxu0 0
    %828 = vmatprep.subr.bf16.mxu0 0
    %829 = vmatpush2.bf16.msra.mxu0 0
    %830 = vmatprep.subr.bf16.mxu0 0
    %831 = vmatpush2.bf16.msra.mxu0 0
    %832 = vmatprep.subr.bf16.mxu0 0
    %833 = vmatpush2.bf16.msra.mxu0 0
    %834 = vmatprep.subr.bf16.mxu0 0
    %835 = vmatpush2.bf16.msra.mxu0 0
    %836 = vmatprep.subr.bf16.mxu0 0
    %837 = vmatpush2.bf16.msra.mxu0 0
    %838 = vmatprep.mubr.bf16.mxu0 0
    %839 = vmatmul.mubr.bf16.gmra.mxu0 %v805
    %v840 = vpop.f32.mrf.mxu0
    %v841 = vadd.f32 0.0, %v840
    %v842 = vpop.f32.mrf.mxu0
    %v843 = vpop.f32.mrf.mxu0
    %v844 = vpop.f32.mrf.mxu0
    %845 = vdwg.mxu0
    %s846 = scalar_lea.vmem [#allocation3], 64
    %v847 = vld [vmem:[%s846] sm:$0xf]
    %v848 = vld [vmem:[%s846 + $0x4] sm:$0xf]
    %v849 = vld [vmem:[%s846 + $0x8] sm:$0xf]
    %v850 = vld [vmem:[%s846 + $0xc] sm:$0xf]
    %v851 = vld [vmem:[%s846 + $0x10] sm:$0xf]
    %v852 = vld [vmem:[%s846 + $0x14] sm:$0xf]
    %v853 = vld [vmem:[%s846 + $0x18] sm:$0xf]
    %v854 = vld [vmem:[%s846 + $0x1c] sm:$0xf]
    %v855 = vld [vmem:[%s846 + $0x20] sm:$0xf]
    %v856 = vld [vmem:[%s846 + $0x24] sm:$0xf]
    %v857 = vld [vmem:[%s846 + $0x28] sm:$0xf]
    %v858 = vld [vmem:[%s846 + $0x2c] sm:$0xf]
    %v859 = vld [vmem:[%s846 + $0x30] sm:$0xf]
    %v860 = vld [vmem:[%s846 + $0x34] sm:$0xf]
    %v861 = vld [vmem:[%s846 + $0x38] sm:$0xf]
    %v862 = vld [vmem:[%s846 + $0x3c] sm:$0xf]
    %s863 = scalar_lea.vmem [#allocation6], 64
    %v864 = vld [vmem:[%s863] sm:$0xf]
    %v865 = vld [vmem:[%s863 + $0x4] sm:$0xf]
    %v866 = vld [vmem:[%s863 + $0x8] sm:$0xf]
    %v867 = vld [vmem:[%s863 + $0xc] sm:$0xf]
    %v868 = vld [vmem:[%s863 + $0x10] sm:$0xf]
    %v869 = vld [vmem:[%s863 + $0x14] sm:$0xf]
    %v870 = vld [vmem:[%s863 + $0x18] sm:$0xf]
    %v871 = vld [vmem:[%s863 + $0x1c] sm:$0xf]
    %v872 = vld [vmem:[%s863 + $0x20] sm:$0xf]
    %v873 = vld [vmem:[%s863 + $0x24] sm:$0xf]
    %v874 = vld [vmem:[%s863 + $0x28] sm:$0xf]
    %v875 = vld [vmem:[%s863 + $0x2c] sm:$0xf]
    %v876 = vld [vmem:[%s863 + $0x30] sm:$0xf]
    %v877 = vld [vmem:[%s863 + $0x34] sm:$0xf]
    %v878 = vld [vmem:[%s863 + $0x38] sm:$0xf]
    %v879 = vld [vmem:[%s863 + $0x3c] sm:$0xf]
    %v896 = vunpack.c.l.b16 %v847
    %v897 = vunpack.c.l.b16 %v848
    %v898 = vunpack.c.l.b16 %v849
    %v899 = vunpack.c.l.b16 %v850
    %v900 = vunpack.c.l.b16 %v851
    %v901 = vunpack.c.l.b16 %v852
    %v902 = vunpack.c.l.b16 %v853
    %v903 = vunpack.c.l.b16 %v854
    %v904 = vunpack.c.l.b16 %v855
    %v905 = vunpack.c.l.b16 %v856
    %v906 = vunpack.c.l.b16 %v857
    %v907 = vunpack.c.l.b16 %v858
    %v908 = vunpack.c.l.b16 %v859
    %v909 = vunpack.c.l.b16 %v860
    %v910 = vunpack.c.l.b16 %v861
    %v911 = vunpack.c.l.b16 %v862
    %v912 = vpack.c.b16 %v897, %v896
    %v913 = vpack.c.b16 %v899, %v898
    %v914 = vpack.c.b16 %v901, %v900
    %v915 = vpack.c.b16 %v903, %v902
    %v916 = vpack.c.b16 %v905, %v904
    %v917 = vpack.c.b16 %v907, %v906
    %v918 = vpack.c.b16 %v909, %v908
    %v919 = vpack.c.b16 %v911, %v910
    %v944 = vunpack.c.l.b16 %v864
    %v945 = vunpack.c.l.b16 %v865
    %v946 = vunpack.c.l.b16 %v866
    %v947 = vunpack.c.l.b16 %v867
    %v948 = vunpack.c.l.b16 %v868
    %v949 = vunpack.c.l.b16 %v869
    %v950 = vunpack.c.l.b16 %v870
    %v951 = vunpack.c.l.b16 %v871
    %v952 = vunpack.c.l.b16 %v872
    %v953 = vunpack.c.l.b16 %v873
    %v954 = vunpack.c.l.b16 %v874
    %v955 = vunpack.c.l.b16 %v875
    %v956 = vunpack.c.l.b16 %v876
    %v957 = vunpack.c.l.b16 %v877
    %v958 = vunpack.c.l.b16 %v878
    %v959 = vunpack.c.l.b16 %v879
    %v960 = vpack.c.b16 %v945, %v944
    %v961 = vpack.c.b16 %v947, %v946
    %v962 = vpack.c.b16 %v949, %v948
    %v963 = vpack.c.b16 %v951, %v950
    %v964 = vpack.c.b16 %v953, %v952
    %v965 = vpack.c.b16 %v955, %v954
    %v966 = vpack.c.b16 %v957, %v956
    %v967 = vpack.c.b16 %v959, %v958
    %976 = vmatprep.subr.bf16.mxu0 0
    %977 = vmatpush1.bf16.msra.mxu0 %v967
    %978 = vmatprep.subr.bf16.mxu0 0
    %979 = vmatpush1.bf16.msra.mxu0 %v966
    %980 = vmatprep.subr.bf16.mxu0 0
    %981 = vmatpush1.bf16.msra.mxu0 %v965
    %982 = vmatprep.subr.bf16.mxu0 0
    %983 = vmatpush1.bf16.msra.mxu0 %v964
    %984 = vmatprep.subr.bf16.mxu0 0
    %985 = vmatpush1.bf16.msra.mxu0 %v963
    %986 = vmatprep.subr.bf16.mxu0 0
    %987 = vmatpush1.bf16.msra.mxu0 %v962
    %988 = vmatprep.subr.bf16.mxu0 0
    %989 = vmatpush1.bf16.msra.mxu0 %v961
    %990 = vmatprep.subr.bf16.mxu0 0
    %991 = vmatpush1.bf16.msra.mxu0 %v960
    %992 = vmatprep.subr.bf16.mxu0 0
    %993 = vmatpush2.bf16.msra.mxu0 0
    %994 = vmatprep.subr.bf16.mxu0 0
    %995 = vmatpush2.bf16.msra.mxu0 0
    %996 = vmatprep.subr.bf16.mxu0 0
    %997 = vmatpush2.bf16.msra.mxu0 0
    %998 = vmatprep.subr.bf16.mxu0 0
    %999 = vmatpush2.bf16.msra.mxu0 0
    %1000 = vmatprep.subr.bf16.mxu0 0
    %1001 = vmatpush2.bf16.msra.mxu0 0
    %1002 = vmatprep.subr.bf16.mxu0 0
    %1003 = vmatpush2.bf16.msra.mxu0 0
    %1004 = vmatprep.subr.bf16.mxu0 0
    %1005 = vmatpush2.bf16.msra.mxu0 0
    %1006 = vmatprep.subr.bf16.mxu0 0
    %1007 = vmatpush2.bf16.msra.mxu0 0
    %1008 = vmatprep.mubr.bf16.mxu0 0
    %1009 = vmatmul.mubr.bf16.gmra.mxu0 %v912
    %v1010 = vpop.f32.mrf.mxu0
    %v1011 = vadd.f32 0.0, %v1010
    %v1012 = vpop.f32.mrf.mxu0
    %v1013 = vpop.f32.mrf.mxu0
    %v1014 = vadd.f32 0.0, %v1013
    %v1015 = vpop.f32.mrf.mxu0
    %1016 = vmatprep.mubr.bf16.mxu0 0
    %1017 = vmatmul.mubr.bf16.gmra.mxu0 %v913
    %v1018 = vpop.f32.mrf.mxu0
    %v1019 = vadd.f32 0.0, %v1018
    %v1020 = vpop.f32.mrf.mxu0
    %v1021 = vpop.f32.mrf.mxu0
    %v1022 = vadd.f32 0.0, %v1021
    %v1023 = vpop.f32.mrf.mxu0
    %1024 = vmatprep.mubr.bf16.mxu0 0
    %1025 = vmatmul.mubr.bf16.gmra.mxu0 %v914
    %v1026 = vpop.f32.mrf.mxu0
    %v1027 = vadd.f32 0.0, %v1026
    %v1028 = vpop.f32.mrf.mxu0
    %v1029 = vpop.f32.mrf.mxu0
    %v1030 = vadd.f32 0.0, %v1029
    %v1031 = vpop.f32.mrf.mxu0
    %1032 = vmatprep.mubr.bf16.mxu0 0
    %1033 = vmatmul.mubr.bf16.gmra.mxu0 %v915
    %v1034 = vpop.f32.mrf.mxu0
    %v1035 = vadd.f32 0.0, %v1034
    %v1036 = vpop.f32.mrf.mxu0
    %v1037 = vpop.f32.mrf.mxu0
    %v1038 = vadd.f32 0.0, %v1037
    %v1039 = vpop.f32.mrf.mxu0
    %1040 = vmatprep.mubr.bf16.mxu0 0
    %1041 = vmatmul.mubr.bf16.gmra.mxu0 %v916
    %v1042 = vpop.f32.mrf.mxu0
    %v1043 = vadd.f32 0.0, %v1042
    %v1044 = vpop.f32.mrf.mxu0
    %v1045 = vpop.f32.mrf.mxu0
    %v1046 = vadd.f32 0.0, %v1045
    %v1047 = vpop.f32.mrf.mxu0
    %1048 = vmatprep.mubr.bf16.mxu0 0
    %1049 = vmatmul.mubr.bf16.gmra.mxu0 %v917
    %v1050 = vpop.f32.mrf.mxu0
    %v1051 = vadd.f32 0.0, %v1050
    %v1052 = vpop.f32.mrf.mxu0
    %v1053 = vpop.f32.mrf.mxu0
    %v1054 = vadd.f32 0.0, %v1053
    %v1055 = vpop.f32.mrf.mxu0
    %1056 = vmatprep.mubr.bf16.mxu0 0
    %1057 = vmatmul.mubr.bf16.gmra.mxu0 %v918
    %v1058 = vpop.f32.mrf.mxu0
    %v1059 = vadd.f32 0.0, %v1058
    %v1060 = vpop.f32.mrf.mxu0
    %v1061 = vpop.f32.mrf.mxu0
    %v1062 = vadd.f32 0.0, %v1061
    %v1063 = vpop.f32.mrf.mxu0
    %1064 = vmatprep.mubr.bf16.mxu0 0
    %1065 = vmatmul.mubr.bf16.gmra.mxu0 %v919
    %v1066 = vpop.f32.mrf.mxu0
    %v1067 = vadd.f32 0.0, %v1066
    %v1068 = vpop.f32.mrf.mxu0
    %v1069 = vpop.f32.mrf.mxu0
    %v1070 = vadd.f32 0.0, %v1069
    %v1071 = vpop.f32.mrf.mxu0
    %1072 = vdwg.mxu0
    %v1073 = vpack.c.bf16 %v1014, %v1011
    %v1074 = vpack.c.bf16 %v1022, %v1019
    %v1075 = vpack.c.bf16 %v1030, %v1027
    %v1076 = vpack.c.bf16 %v1038, %v1035
    %v1077 = vpack.c.bf16 %v1046, %v1043
    %v1078 = vpack.c.bf16 %v1054, %v1051
    %v1079 = vpack.c.bf16 %v1062, %v1059
    %v1080 = vpack.c.bf16 %v1070, %v1067
    %1081 = vmatprep.subr.bf16.mxu0 0
    %1082 = vmatpush1.bf16.msra.mxu0 %v392
    %1083 = vmatprep.subr.bf16.mxu0 0
    %1084 = vmatpush1.bf16.msra.mxu0 %v391
    %1085 = vmatprep.subr.bf16.mxu0 0
    %1086 = vmatpush1.bf16.msra.mxu0 %v390
    %1087 = vmatprep.subr.bf16.mxu0 0
    %1088 = vmatpush1.bf16.msra.mxu0 %v389
    %1089 = vmatprep.subr.bf16.mxu0 0
    %1090 = vmatpush1.bf16.msra.mxu0 %v388
    %1091 = vmatprep.subr.bf16.mxu0 0
    %1092 = vmatpush1.bf16.msra.mxu0 %v387
    %1093 = vmatprep.subr.bf16.mxu0 0
    %1094 = vmatpush1.bf16.msra.mxu0 %v386
    %1095 = vmatprep.subr.bf16.mxu0 0
    %1096 = vmatpush1.bf16.msra.mxu0 %v385
    %1097 = vmatprep.subr.bf16.mxu0 0
    %1098 = vmatpush2.bf16.msra.mxu0 0
    %1099 = vmatprep.subr.bf16.mxu0 0
    %1100 = vmatpush2.bf16.msra.mxu0 0
    %1101 = vmatprep.subr.bf16.mxu0 0
    %1102 = vmatpush2.bf16.msra.mxu0 0
    %1103 = vmatprep.subr.bf16.mxu0 0
    %1104 = vmatpush2.bf16.msra.mxu0 0
    %1105 = vmatprep.subr.bf16.mxu0 0
    %1106 = vmatpush2.bf16.msra.mxu0 0
    %1107 = vmatprep.subr.bf16.mxu0 0
    %1108 = vmatpush2.bf16.msra.mxu0 0
    %1109 = vmatprep.subr.bf16.mxu0 0
    %1110 = vmatpush2.bf16.msra.mxu0 0
    %1111 = vmatprep.subr.bf16.mxu0 0
    %1112 = vmatpush2.bf16.msra.mxu0 0
    %1113 = vmatprep.mubr.bf16.mxu0 0
    %1114 = vmatmul.mubr.bf16.gmra.mxu0 %v1073
    %v1115 = vpop.f32.mrf.mxu0
    %v1116 = vadd.f32 %v351, %v1115
    %v1117 = vpop.f32.mrf.mxu0
    %v1118 = vpop.f32.mrf.mxu0
    %v1119 = vadd.f32 %v351, %v1118
    %v1120 = vpop.f32.mrf.mxu0
    %1121 = vmatprep.mubr.bf16.mxu0 0
    %1122 = vmatmul.mubr.bf16.gmra.mxu0 %v1074
    %v1123 = vpop.f32.mrf.mxu0
    %v1124 = vadd.f32 %v351, %v1123
    %v1125 = vpop.f32.mrf.mxu0
    %v1126 = vpop.f32.mrf.mxu0
    %v1127 = vadd.f32 %v351, %v1126
    %v1128 = vpop.f32.mrf.mxu0
    %1129 = vmatprep.mubr.bf16.mxu0 0
    %1130 = vmatmul.mubr.bf16.gmra.mxu0 %v1075
    %v1131 = vpop.f32.mrf.mxu0
    %v1132 = vadd.f32 %v351, %v1131
    %v1133 = vpop.f32.mrf.mxu0
    %v1134 = vpop.f32.mrf.mxu0
    %v1135 = vadd.f32 %v351, %v1134
    %v1136 = vpop.f32.mrf.mxu0
    %1137 = vmatprep.mubr.bf16.mxu0 0
    %1138 = vmatmul.mubr.bf16.gmra.mxu0 %v1076
    %v1139 = vpop.f32.mrf.mxu0
    %v1140 = vadd.f32 %v351, %v1139
    %v1141 = vpop.f32.mrf.mxu0
    %v1142 = vpop.f32.mrf.mxu0
    %v1143 = vadd.f32 %v351, %v1142
    %v1144 = vpop.f32.mrf.mxu0
    %1145 = vmatprep.mubr.bf16.mxu0 0
    %1146 = vmatmul.mubr.bf16.gmra.mxu0 %v1077
    %v1147 = vpop.f32.mrf.mxu0
    %v1148 = vadd.f32 %v351, %v1147
    %v1149 = vpop.f32.mrf.mxu0
    %v1150 = vpop.f32.mrf.mxu0
    %v1151 = vadd.f32 %v351, %v1150
    %v1152 = vpop.f32.mrf.mxu0
    %1153 = vmatprep.mubr.bf16.mxu0 0
    %1154 = vmatmul.mubr.bf16.gmra.mxu0 %v1078
    %v1155 = vpop.f32.mrf.mxu0
    %v1156 = vadd.f32 %v351, %v1155
    %v1157 = vpop.f32.mrf.mxu0
    %v1158 = vpop.f32.mrf.mxu0
    %v1159 = vadd.f32 %v351, %v1158
    %v1160 = vpop.f32.mrf.mxu0
    %1161 = vmatprep.mubr.bf16.mxu0 0
    %1162 = vmatmul.mubr.bf16.gmra.mxu0 %v1079
    %v1163 = vpop.f32.mrf.mxu0
    %v1164 = vadd.f32 %v351, %v1163
    %v1165 = vpop.f32.mrf.mxu0
    %v1166 = vpop.f32.mrf.mxu0
    %v1167 = vadd.f32 %v351, %v1166
    %v1168 = vpop.f32.mrf.mxu0
    %1169 = vmatprep.mubr.bf16.mxu0 0
    %1170 = vmatmul.mubr.bf16.gmra.mxu0 %v1080
    %v1171 = vpop.f32.mrf.mxu0
    %v1172 = vadd.f32 %v351, %v1171
    %v1173 = vpop.f32.mrf.mxu0
    %v1174 = vpop.f32.mrf.mxu0
    %v1175 = vadd.f32 %v351, %v1174
    %v1176 = vpop.f32.mrf.mxu0
    %1177 = vdwg.mxu0
    %v1178 = vmax.f32 %v1116, 0.0
    %v1179 = vmax.f32 %v1119, 0.0
    %v1180 = vmax.f32 %v1124, 0.0
    %v1181 = vmax.f32 %v1127, 0.0
    %v1182 = vmax.f32 %v1132, 0.0
    %v1183 = vmax.f32 %v1135, 0.0
    %v1184 = vmax.f32 %v1140, 0.0
    %v1185 = vmax.f32 %v1143, 0.0
    %v1186 = vmax.f32 %v1148, 0.0
    %v1187 = vmax.f32 %v1151, 0.0
    %v1188 = vmax.f32 %v1156, 0.0
    %v1189 = vmax.f32 %v1159, 0.0
    %v1190 = vmax.f32 %v1164, 0.0
    %v1191 = vmax.f32 %v1167, 0.0
    %v1192 = vmax.f32 %v1172, 0.0
    %v1193 = vmax.f32 %v1175, 0.0
    %v1194 = vpack.c.bf16 %v1179, %v1178
    %v1195 = vpack.c.bf16 %v1181, %v1180
    %v1196 = vpack.c.bf16 %v1183, %v1182
    %v1197 = vpack.c.bf16 %v1185, %v1184
    %v1198 = vpack.c.bf16 %v1187, %v1186
    %v1199 = vpack.c.bf16 %v1189, %v1188
    %v1200 = vpack.c.bf16 %v1191, %v1190
    %v1201 = vpack.c.bf16 %v1193, %v1192
    %1202 = vmatprep.subr.bf16.mxu0 0
    %1203 = vmatpush1.bf16.msra.mxu0 %v1201
    %1204 = vmatprep.subr.bf16.mxu0 0
    %1205 = vmatpush1.bf16.msra.mxu0 %v1200
    %1206 = vmatprep.subr.bf16.mxu0 0
    %1207 = vmatpush1.bf16.msra.mxu0 %v1199
    %1208 = vmatprep.subr.bf16.mxu0 0
    %1209 = vmatpush1.bf16.msra.mxu0 %v1198
    %1210 = vmatprep.subr.bf16.mxu0 0
    %1211 = vmatpush1.bf16.msra.mxu0 %v1197
    %1212 = vmatprep.subr.bf16.mxu0 0
    %1213 = vmatpush1.bf16.msra.mxu0 %v1196
    %1214 = vmatprep.subr.bf16.mxu0 0
    %1215 = vmatpush1.bf16.msra.mxu0 %v1195
    %1216 = vmatprep.subr.bf16.mxu0 0
    %1217 = vmatpush1.bf16.msra.mxu0 %v1194
    %1218 = vmatprep.subr.bf16.mxu0 0
    %1219 = vmatpush2.bf16.msra.mxu0 0
    %1220 = vmatprep.subr.bf16.mxu0 0
    %1221 = vmatpush2.bf16.msra.mxu0 0
    %1222 = vmatprep.subr.bf16.mxu0 0
    %1223 = vmatpush2.bf16.msra.mxu0 0
    %1224 = vmatprep.subr.bf16.mxu0 0
    %1225 = vmatpush2.bf16.msra.mxu0 0
    %1226 = vmatprep.subr.bf16.mxu0 0
    %1227 = vmatpush2.bf16.msra.mxu0 0
    %1228 = vmatprep.subr.bf16.mxu0 0
    %1229 = vmatpush2.bf16.msra.mxu0 0
    %1230 = vmatprep.subr.bf16.mxu0 0
    %1231 = vmatpush2.bf16.msra.mxu0 0
    %1232 = vmatprep.subr.bf16.mxu0 0
    %1233 = vmatpush2.bf16.msra.mxu0 0
    %1234 = vmatprep.mubr.bf16.mxu0 0
    %1235 = vmatmul.mubr.bf16.gmra.mxu0 %v912
    %v1236 = vpop.f32.mrf.mxu0
    %v1237 = vadd.f32 0.0, %v1236
    %v1238 = vpop.f32.mrf.mxu0
    %v1239 = vpop.f32.mrf.mxu0
    %v1240 = vadd.f32 0.0, %v1239
    %v1241 = vpop.f32.mrf.mxu0
    %1242 = vmatprep.mubr.bf16.mxu0 0
    %1243 = vmatmul.mubr.bf16.gmra.mxu0 %v913
    %v1244 = vpop.f32.mrf.mxu0
    %v1245 = vadd.f32 0.0, %v1244
    %v1246 = vpop.f32.mrf.mxu0
    %v1247 = vpop.f32.mrf.mxu0
    %v1248 = vadd.f32 0.0, %v1247
    %v1249 = vpop.f32.mrf.mxu0
    %1250 = vmatprep.mubr.bf16.mxu0 0
    %1251 = vmatmul.mubr.bf16.gmra.mxu0 %v914
    %v1252 = vpop.f32.mrf.mxu0
    %v1253 = vadd.f32 0.0, %v1252
    %v1254 = vpop.f32.mrf.mxu0
    %v1255 = vpop.f32.mrf.mxu0
    %v1256 = vadd.f32 0.0, %v1255
    %v1257 = vpop.f32.mrf.mxu0
    %1258 = vmatprep.mubr.bf16.mxu0 0
    %1259 = vmatmul.mubr.bf16.gmra.mxu0 %v915
    %v1260 = vpop.f32.mrf.mxu0
    %v1261 = vadd.f32 0.0, %v1260
    %v1262 = vpop.f32.mrf.mxu0
    %v1263 = vpop.f32.mrf.mxu0
    %v1264 = vadd.f32 0.0, %v1263
    %v1265 = vpop.f32.mrf.mxu0
    %1266 = vmatprep.mubr.bf16.mxu0 0
    %1267 = vmatmul.mubr.bf16.gmra.mxu0 %v916
    %v1268 = vpop.f32.mrf.mxu0
    %v1269 = vadd.f32 0.0, %v1268
    %v1270 = vpop.f32.mrf.mxu0
    %v1271 = vpop.f32.mrf.mxu0
    %v1272 = vadd.f32 0.0, %v1271
    %v1273 = vpop.f32.mrf.mxu0
    %1274 = vmatprep.mubr.bf16.mxu0 0
    %1275 = vmatmul.mubr.bf16.gmra.mxu0 %v917
    %v1276 = vpop.f32.mrf.mxu0
    %v1277 = vadd.f32 0.0, %v1276
    %v1278 = vpop.f32.mrf.mxu0
    %v1279 = vpop.f32.mrf.mxu0
    %v1280 = vadd.f32 0.0, %v1279
    %v1281 = vpop.f32.mrf.mxu0
    %1282 = vmatprep.mubr.bf16.mxu0 0
    %1283 = vmatmul.mubr.bf16.gmra.mxu0 %v918
    %v1284 = vpop.f32.mrf.mxu0
    %v1285 = vadd.f32 0.0, %v1284
    %v1286 = vpop.f32.mrf.mxu0
    %v1287 = vpop.f32.mrf.mxu0
    %v1288 = vadd.f32 0.0, %v1287
    %v1289 = vpop.f32.mrf.mxu0
    %1290 = vmatprep.mubr.bf16.mxu0 0
    %1291 = vmatmul.mubr.bf16.gmra.mxu0 %v919
    %v1292 = vpop.f32.mrf.mxu0
    %v1293 = vadd.f32 0.0, %v1292
    %v1294 = vpop.f32.mrf.mxu0
    %v1295 = vpop.f32.mrf.mxu0
    %v1296 = vadd.f32 0.0, %v1295
    %v1297 = vpop.f32.mrf.mxu0
    %1298 = vdwg.mxu0
    %v1299 = vpack.c.bf16 %v1240, %v1237
    %v1300 = vpack.c.bf16 %v1248, %v1245
    %v1301 = vpack.c.bf16 %v1256, %v1253
    %v1302 = vpack.c.bf16 %v1264, %v1261
    %v1303 = vpack.c.bf16 %v1272, %v1269
    %v1304 = vpack.c.bf16 %v1280, %v1277
    %v1305 = vpack.c.bf16 %v1288, %v1285
    %v1306 = vpack.c.bf16 %v1296, %v1293
    %1307 = vmatprep.subr.bf16.mxu0 0
    %1308 = vmatpush1.bf16.msra.mxu0 %v691
    %1309 = vmatprep.subr.bf16.mxu0 0
    %1310 = vmatpush1.bf16.msra.mxu0 %v690
    %1311 = vmatprep.subr.bf16.mxu0 0
    %1312 = vmatpush1.bf16.msra.mxu0 %v689
    %1313 = vmatprep.subr.bf16.mxu0 0
    %1314 = vmatpush1.bf16.msra.mxu0 %v688
    %1315 = vmatprep.subr.bf16.mxu0 0
    %1316 = vmatpush1.bf16.msra.mxu0 %v687
    %1317 = vmatprep.subr.bf16.mxu0 0
    %1318 = vmatpush1.bf16.msra.mxu0 %v686
    %1319 = vmatprep.subr.bf16.mxu0 0
    %1320 = vmatpush1.bf16.msra.mxu0 %v685
    %1321 = vmatprep.subr.bf16.mxu0 0
    %1322 = vmatpush1.bf16.msra.mxu0 %v684
    %1323 = vmatprep.subr.bf16.mxu0 0
    %1324 = vmatpush2.bf16.msra.mxu0 0
    %1325 = vmatprep.subr.bf16.mxu0 0
    %1326 = vmatpush2.bf16.msra.mxu0 0
    %1327 = vmatprep.subr.bf16.mxu0 0
    %1328 = vmatpush2.bf16.msra.mxu0 0
    %1329 = vmatprep.subr.bf16.mxu0 0
    %1330 = vmatpush2.bf16.msra.mxu0 0
    %1331 = vmatprep.subr.bf16.mxu0 0
    %1332 = vmatpush2.bf16.msra.mxu0 0
    %1333 = vmatprep.subr.bf16.mxu0 0
    %1334 = vmatpush2.bf16.msra.mxu0 0
    %1335 = vmatprep.subr.bf16.mxu0 0
    %1336 = vmatpush2.bf16.msra.mxu0 0
    %1337 = vmatprep.subr.bf16.mxu0 0
    %1338 = vmatpush2.bf16.msra.mxu0 0
    %1339 = vmatprep.mubr.bf16.mxu0 0
    %1340 = vmatmul.mubr.bf16.gmra.mxu0 %v1299
    %v1341 = vpop.f32.mrf.mxu0
    %v1342 = vadd.f32 %v650, %v1341
    %v1343 = vpop.f32.mrf.mxu0
    %v1344 = vpop.f32.mrf.mxu0
    %v1345 = vadd.f32 %v650, %v1344
    %v1346 = vpop.f32.mrf.mxu0
    %1347 = vmatprep.mubr.bf16.mxu0 0
    %1348 = vmatmul.mubr.bf16.gmra.mxu0 %v1300
    %v1349 = vpop.f32.mrf.mxu0
    %v1350 = vadd.f32 %v650, %v1349
    %v1351 = vpop.f32.mrf.mxu0
    %v1352 = vpop.f32.mrf.mxu0
    %v1353 = vadd.f32 %v650, %v1352
    %v1354 = vpop.f32.mrf.mxu0
    %1355 = vmatprep.mubr.bf16.mxu0 0
    %1356 = vmatmul.mubr.bf16.gmra.mxu0 %v1301
    %v1357 = vpop.f32.mrf.mxu0
    %v1358 = vadd.f32 %v650, %v1357
    %v1359 = vpop.f32.mrf.mxu0
    %v1360 = vpop.f32.mrf.mxu0
    %v1361 = vadd.f32 %v650, %v1360
    %v1362 = vpop.f32.mrf.mxu0
    %1363 = vmatprep.mubr.bf16.mxu0 0
    %1364 = vmatmul.mubr.bf16.gmra.mxu0 %v1302
    %v1365 = vpop.f32.mrf.mxu0
    %v1366 = vadd.f32 %v650, %v1365
    %v1367 = vpop.f32.mrf.mxu0
    %v1368 = vpop.f32.mrf.mxu0
    %v1369 = vadd.f32 %v650, %v1368
    %v1370 = vpop.f32.mrf.mxu0
    %1371 = vmatprep.mubr.bf16.mxu0 0
    %1372 = vmatmul.mubr.bf16.gmra.mxu0 %v1303
    %v1373 = vpop.f32.mrf.mxu0
    %v1374 = vadd.f32 %v650, %v1373
    %v1375 = vpop.f32.mrf.mxu0
    %v1376 = vpop.f32.mrf.mxu0
    %v1377 = vadd.f32 %v650, %v1376
    %v1378 = vpop.f32.mrf.mxu0
    %1379 = vmatprep.mubr.bf16.mxu0 0
    %1380 = vmatmul.mubr.bf16.gmra.mxu0 %v1304
    %v1381 = vpop.f32.mrf.mxu0
    %v1382 = vadd.f32 %v650, %v1381
    %v1383 = vpop.f32.mrf.mxu0
    %v1384 = vpop.f32.mrf.mxu0
    %v1385 = vadd.f32 %v650, %v1384
    %v1386 = vpop.f32.mrf.mxu0
    %1387 = vmatprep.mubr.bf16.mxu0 0
    %1388 = vmatmul.mubr.bf16.gmra.mxu0 %v1305
    %v1389 = vpop.f32.mrf.mxu0
    %v1390 = vadd.f32 %v650, %v1389
    %v1391 = vpop.f32.mrf.mxu0
    %v1392 = vpop.f32.mrf.mxu0
    %v1393 = vadd.f32 %v650, %v1392
    %v1394 = vpop.f32.mrf.mxu0
    %1395 = vmatprep.mubr.bf16.mxu0 0
    %1396 = vmatmul.mubr.bf16.gmra.mxu0 %v1306
    %v1397 = vpop.f32.mrf.mxu0
    %v1398 = vadd.f32 %v650, %v1397
    %v1399 = vpop.f32.mrf.mxu0
    %v1400 = vpop.f32.mrf.mxu0
    %v1401 = vadd.f32 %v650, %v1400
    %v1402 = vpop.f32.mrf.mxu0
    %1403 = vdwg.mxu0
    %v1404 = vpack.c.bf16 %v1345, %v1342
    %v1405 = vpack.c.bf16 %v1353, %v1350
    %v1406 = vpack.c.bf16 %v1361, %v1358
    %v1407 = vpack.c.bf16 %v1369, %v1366
    %v1408 = vpack.c.bf16 %v1377, %v1374
    %v1409 = vpack.c.bf16 %v1385, %v1382
    %v1410 = vpack.c.bf16 %v1393, %v1390
    %v1411 = vpack.c.bf16 %v1401, %v1398
    %s1412 = scalar_lea.vmem [#allocation8], 4
    %v1413 = vld [vmem:[%s1412] sm:$0xf]
    %1414 = vmatprep.subr.bf16.mxu0 0
    %1415 = vmatpush1.bf16.msra.mxu0 %v1411
    %1416 = vmatprep.subr.bf16.mxu0 0
    %1417 = vmatpush1.bf16.msra.mxu0 %v1410
    %1418 = vmatprep.subr.bf16.mxu0 0
    %1419 = vmatpush1.bf16.msra.mxu0 %v1409
    %1420 = vmatprep.subr.bf16.mxu0 0
    %1421 = vmatpush1.bf16.msra.mxu0 %v1408
    %1422 = vmatprep.subr.bf16.mxu0 0
    %1423 = vmatpush1.bf16.msra.mxu0 %v1407
    %1424 = vmatprep.subr.bf16.mxu0 0
    %1425 = vmatpush1.bf16.msra.mxu0 %v1406
    %1426 = vmatprep.subr.bf16.mxu0 0
    %1427 = vmatpush1.bf16.msra.mxu0 %v1405
    %1428 = vmatprep.subr.bf16.mxu0 0
    %1429 = vmatpush1.bf16.msra.mxu0 %v1404
    %1430 = vmatprep.subr.bf16.mxu0 0
    %1431 = vmatpush2.bf16.msra.mxu0 0
    %1432 = vmatprep.subr.bf16.mxu0 0
    %1433 = vmatpush2.bf16.msra.mxu0 0
    %1434 = vmatprep.subr.bf16.mxu0 0
    %1435 = vmatpush2.bf16.msra.mxu0 0
    %1436 = vmatprep.subr.bf16.mxu0 0
    %1437 = vmatpush2.bf16.msra.mxu0 0
    %1438 = vmatprep.subr.bf16.mxu0 0
    %1439 = vmatpush2.bf16.msra.mxu0 0
    %1440 = vmatprep.subr.bf16.mxu0 0
    %1441 = vmatpush2.bf16.msra.mxu0 0
    %1442 = vmatprep.subr.bf16.mxu0 0
    %1443 = vmatpush2.bf16.msra.mxu0 0
    %1444 = vmatprep.subr.bf16.mxu0 0
    %1445 = vmatpush2.bf16.msra.mxu0 0
    %1446 = vmatprep.mubr.bf16.mxu0 0
    %1447 = vmatmul.mubr.bf16.gmra.mxu0 %v1413
    %v1448 = vpop.f32.mrf.mxu0
    %v1449 = vadd.f32 0.0, %v1448
    %v1450 = vpop.f32.mrf.mxu0
    %v1451 = vpop.f32.mrf.mxu0
    %v1452 = vpop.f32.mrf.mxu0
    %1453 = vdwg.mxu0
    %v1454 = vpack.c.bf16 %v841, %v841
    %s1455 = scalar_lea.vmem [#allocation9], 128
    %v1456 = vld [vmem:[%s1455] sm:$0xf]
    %v1457 = vld [vmem:[%s1455 + $0x4] sm:$0xf]
    %v1458 = vld [vmem:[%s1455 + $0x8] sm:$0xf]
    %v1459 = vld [vmem:[%s1455 + $0xc] sm:$0xf]
    %v1460 = vld [vmem:[%s1455 + $0x10] sm:$0xf]
    %v1461 = vld [vmem:[%s1455 + $0x14] sm:$0xf]
    %v1462 = vld [vmem:[%s1455 + $0x18] sm:$0xf]
    %v1463 = vld [vmem:[%s1455 + $0x1c] sm:$0xf]
    %v1464 = vld [vmem:[%s1455 + $0x20] sm:$0xf]
    %v1465 = vld [vmem:[%s1455 + $0x24] sm:$0xf]
    %v1466 = vld [vmem:[%s1455 + $0x28] sm:$0xf]
    %v1467 = vld [vmem:[%s1455 + $0x2c] sm:$0xf]
    %v1468 = vld [vmem:[%s1455 + $0x30] sm:$0xf]
    %v1469 = vld [vmem:[%s1455 + $0x34] sm:$0xf]
    %v1470 = vld [vmem:[%s1455 + $0x38] sm:$0xf]
    %v1471 = vld [vmem:[%s1455 + $0x3c] sm:$0xf]
    %s1472 = scalar_lea.vmem %s4, 2
    %v1473 = vld [vmem:[%s1472] sm:$0x1]
    %v1475 = vlaneseq
    %v1476 = vshrl.u32 %v1475, 7
    %v1477 = vsub.s32 0, %v1476
    %v1478 = vrot.slane %v1473, %v1477
    %v1496 = vunpack.c.l.b16 %v1456
    %v1497 = vunpack.c.l.b16 %v1457
    %v1498 = vunpack.c.l.b16 %v1458
    %v1499 = vunpack.c.l.b16 %v1459
    %v1500 = vunpack.c.l.b16 %v1460
    %v1501 = vunpack.c.l.b16 %v1461
    %v1502 = vunpack.c.l.b16 %v1462
    %v1503 = vunpack.c.l.b16 %v1463
    %v1504 = vunpack.c.l.b16 %v1464
    %v1505 = vunpack.c.l.b16 %v1465
    %v1506 = vunpack.c.l.b16 %v1466
    %v1507 = vunpack.c.l.b16 %v1467
    %v1508 = vunpack.c.l.b16 %v1468
    %v1509 = vunpack.c.l.b16 %v1469
    %v1510 = vunpack.c.l.b16 %v1470
    %v1511 = vunpack.c.l.b16 %v1471
    %v1512 = vpack.c.b16 %v1497, %v1496
    %v1513 = vpack.c.b16 %v1499, %v1498
    %v1514 = vpack.c.b16 %v1501, %v1500
    %v1515 = vpack.c.b16 %v1503, %v1502
    %v1516 = vpack.c.b16 %v1505, %v1504
    %v1517 = vpack.c.b16 %v1507, %v1506
    %v1518 = vpack.c.b16 %v1509, %v1508
    %v1519 = vpack.c.b16 %v1511, %v1510
    %1528 = vmatprep.subr.bf16.mxu0 0
    %1529 = vmatpush1.bf16.msra.mxu0 %v1519
    %1530 = vmatprep.subr.bf16.mxu0 0
    %1531 = vmatpush1.bf16.msra.mxu0 %v1518
    %1532 = vmatprep.subr.bf16.mxu0 0
    %1533 = vmatpush1.bf16.msra.mxu0 %v1517
    %1534 = vmatprep.subr.bf16.mxu0 0
    %1535 = vmatpush1.bf16.msra.mxu0 %v1516
    %1536 = vmatprep.subr.bf16.mxu0 0
    %1537 = vmatpush1.bf16.msra.mxu0 %v1515
    %1538 = vmatprep.subr.bf16.mxu0 0
    %1539 = vmatpush1.bf16.msra.mxu0 %v1514
    %1540 = vmatprep.subr.bf16.mxu0 0
    %1541 = vmatpush1.bf16.msra.mxu0 %v1513
    %1542 = vmatprep.subr.bf16.mxu0 0
    %1543 = vmatpush1.bf16.msra.mxu0 %v1512
    %1544 = vmatprep.subr.bf16.mxu0 0
    %1545 = vmatpush2.bf16.msra.mxu0 0
    %1546 = vmatprep.subr.bf16.mxu0 0
    %1547 = vmatpush2.bf16.msra.mxu0 0
    %1548 = vmatprep.subr.bf16.mxu0 0
    %1549 = vmatpush2.bf16.msra.mxu0 0
    %1550 = vmatprep.subr.bf16.mxu0 0
    %1551 = vmatpush2.bf16.msra.mxu0 0
    %1552 = vmatprep.subr.bf16.mxu0 0
    %1553 = vmatpush2.bf16.msra.mxu0 0
    %1554 = vmatprep.subr.bf16.mxu0 0
    %1555 = vmatpush2.bf16.msra.mxu0 0
    %1556 = vmatprep.subr.bf16.mxu0 0
    %1557 = vmatpush2.bf16.msra.mxu0 0
    %1558 = vmatprep.subr.bf16.mxu0 0
    %1559 = vmatpush2.bf16.msra.mxu0 0
    %1560 = vmatprep.mubr.bf16.mxu0 0
    %1561 = vmatmul.mubr.bf16.gmra.mxu0 %v1454
    %v1562 = vpop.f32.mrf.mxu0
    %v1563 = vadd.f32 %v1478, %v1562
    %v1564 = vpop.f32.mrf.mxu0
    %v1565 = vpop.f32.mrf.mxu0
    %v1566 = vpop.f32.mrf.mxu0
    %1567 = vdwg.mxu0
    %v1568 = vmax.f32 %v1563, 0.0
    %v1569 = vpack.c.bf16 %v1568, %v1568
    %s1570 = scalar_lea.vmem [#allocation9], 192
    %v1571 = vld [vmem:[%s1570] sm:$0xf]
    %v1572 = vld [vmem:[%s1570 + $0x4] sm:$0xf]
    %v1573 = vld [vmem:[%s1570 + $0x8] sm:$0xf]
    %v1574 = vld [vmem:[%s1570 + $0xc] sm:$0xf]
    %v1575 = vld [vmem:[%s1570 + $0x10] sm:$0xf]
    %v1576 = vld [vmem:[%s1570 + $0x14] sm:$0xf]
    %v1577 = vld [vmem:[%s1570 + $0x18] sm:$0xf]
    %v1578 = vld [vmem:[%s1570 + $0x1c] sm:$0xf]
    %v1579 = vld [vmem:[%s1570 + $0x20] sm:$0xf]
    %v1580 = vld [vmem:[%s1570 + $0x24] sm:$0xf]
    %v1581 = vld [vmem:[%s1570 + $0x28] sm:$0xf]
    %v1582 = vld [vmem:[%s1570 + $0x2c] sm:$0xf]
    %v1583 = vld [vmem:[%s1570 + $0x30] sm:$0xf]
    %v1584 = vld [vmem:[%s1570 + $0x34] sm:$0xf]
    %v1585 = vld [vmem:[%s1570 + $0x38] sm:$0xf]
    %v1586 = vld [vmem:[%s1570 + $0x3c] sm:$0xf]
    %s1587 = scalar_lea.vmem %s4, 3
    %v1588 = vld [vmem:[%s1587] sm:$0x1]
    %v1590 = vlaneseq
    %v1591 = vshrl.u32 %v1590, 7
    %v1592 = vsub.s32 0, %v1591
    %v1593 = vrot.slane %v1588, %v1592
    %v1611 = vunpack.c.l.b16 %v1571
    %v1612 = vunpack.c.l.b16 %v1572
    %v1613 = vunpack.c.l.b16 %v1573
    %v1614 = vunpack.c.l.b16 %v1574
    %v1615 = vunpack.c.l.b16 %v1575
    %v1616 = vunpack.c.l.b16 %v1576
    %v1617 = vunpack.c.l.b16 %v1577
    %v1618 = vunpack.c.l.b16 %v1578
    %v1619 = vunpack.c.l.b16 %v1579
    %v1620 = vunpack.c.l.b16 %v1580
    %v1621 = vunpack.c.l.b16 %v1581
    %v1622 = vunpack.c.l.b16 %v1582
    %v1623 = vunpack.c.l.b16 %v1583
    %v1624 = vunpack.c.l.b16 %v1584
    %v1625 = vunpack.c.l.b16 %v1585
    %v1626 = vunpack.c.l.b16 %v1586
    %v1627 = vpack.c.b16 %v1612, %v1611
    %v1628 = vpack.c.b16 %v1614, %v1613
    %v1629 = vpack.c.b16 %v1616, %v1615
    %v1630 = vpack.c.b16 %v1618, %v1617
    %v1631 = vpack.c.b16 %v1620, %v1619
    %v1632 = vpack.c.b16 %v1622, %v1621
    %v1633 = vpack.c.b16 %v1624, %v1623
    %v1634 = vpack.c.b16 %v1626, %v1625
    %1643 = vmatprep.subr.bf16.mxu0 0
    %1644 = vmatpush1.bf16.msra.mxu0 %v1634
    %1645 = vmatprep.subr.bf16.mxu0 0
    %1646 = vmatpush1.bf16.msra.mxu0 %v1633
    %1647 = vmatprep.subr.bf16.mxu0 0
    %1648 = vmatpush1.bf16.msra.mxu0 %v1632
    %1649 = vmatprep.subr.bf16.mxu0 0
    %1650 = vmatpush1.bf16.msra.mxu0 %v1631
    %1651 = vmatprep.subr.bf16.mxu0 0
    %1652 = vmatpush1.bf16.msra.mxu0 %v1630
    %1653 = vmatprep.subr.bf16.mxu0 0
    %1654 = vmatpush1.bf16.msra.mxu0 %v1629
    %1655 = vmatprep.subr.bf16.mxu0 0
    %1656 = vmatpush1.bf16.msra.mxu0 %v1628
    %1657 = vmatprep.subr.bf16.mxu0 0
    %1658 = vmatpush1.bf16.msra.mxu0 %v1627
    %1659 = vmatprep.subr.bf16.mxu0 0
    %1660 = vmatpush2.bf16.msra.mxu0 0
    %1661 = vmatprep.subr.bf16.mxu0 0
    %1662 = vmatpush2.bf16.msra.mxu0 0
    %1663 = vmatprep.subr.bf16.mxu0 0
    %1664 = vmatpush2.bf16.msra.mxu0 0
    %1665 = vmatprep.subr.bf16.mxu0 0
    %1666 = vmatpush2.bf16.msra.mxu0 0
    %1667 = vmatprep.subr.bf16.mxu0 0
    %1668 = vmatpush2.bf16.msra.mxu0 0
    %1669 = vmatprep.subr.bf16.mxu0 0
    %1670 = vmatpush2.bf16.msra.mxu0 0
    %1671 = vmatprep.subr.bf16.mxu0 0
    %1672 = vmatpush2.bf16.msra.mxu0 0
    %1673 = vmatprep.subr.bf16.mxu0 0
    %1674 = vmatpush2.bf16.msra.mxu0 0
    %1675 = vmatprep.mubr.bf16.mxu0 0
    %1676 = vmatmul.mubr.bf16.gmra.mxu0 %v1569
    %v1677 = vpop.f32.mrf.mxu0
    %v1678 = vadd.f32 %v1593, %v1677
    %v1679 = vpop.f32.mrf.mxu0
    %v1680 = vpop.f32.mrf.mxu0
    %v1681 = vpop.f32.mrf.mxu0
    %1682 = vdwg.mxu0
    %v1683 = vxor.u32 %v1678, 2147483648
    %v1684 = vmul.f32 %v1683, 1.442695
    %v1685 = vpow.pop %v1684
    %v1686 = vadd.f32 %v1685, 1.0
    %v1687 = vrcp.pop %v1686
    %v1688 = vmul.f32 1.0, %v1687
    %v1689 = vld [vmem:[#allocation11] sm:$0xff]
    %s1690 = scalar_lea.vmem [#allocation11], 8
    %v1691 = vld [vmem:[%s1690] sm:$0xff]
    %v1692 = vmax.f32 %v1688, 1e-38
    %v1693 = vlog2.pop %v1692
    %v1694 = vmul.f32 %v1693, 0.6931472
    %v1695 = vmax.f32 %v1694, -100.0
    %v1696 = vsub.f32 1.0, %v1688
    %v1697 = vmax.f32 %v1696, 1e-38
    %v1698 = vlog2.pop %v1697
    %v1699 = vmul.f32 %v1698, 0.6931472
    %v1700 = vmax.f32 %v1699, -100.0
    %v1701 = vmul.f32 %v1689, %v1695
    %v1702 = vsub.f32 1.0, %v1689
    %v1703 = vmul.f32 %v1702, %v1700
    %v1704 = vadd.f32 %v1701, %v1703
    %v1705 = vsub.f32 0.0, %v1704
    %v1706 = vmul.f32 %v1705, %v1691
    %1707 = vadd.xlane.f32.xlu0 %v1706
    %v1708 = vpop.xlane.xlu0 %1707
    %v1709 = vrot.slane %v1708, 4
    %v1710 = vadd.f32 %v1708, %v1709
    %v1711 = vrot.slane %v1710, 2
    %v1712 = vadd.f32 %v1710, %v1711
    %v1713 = vrot.slane %v1712, 1
    %v1714 = vadd.f32 %v1712, %v1713
    %s1715 = vtos %v1714
    %s1716 = scalar_lea.vmem [#allocation9], 256
    %v1717 = vld [vmem:[%s1716] sm:$0xf]
    %v1718 = vld [vmem:[%s1716 + $0x4] sm:$0xf]
    %v1719 = vld [vmem:[%s1716 + $0x8] sm:$0xf]
    %v1720 = vld [vmem:[%s1716 + $0xc] sm:$0xf]
    %v1721 = vld [vmem:[%s1716 + $0x10] sm:$0xf]
    %v1722 = vld [vmem:[%s1716 + $0x14] sm:$0xf]
    %v1723 = vld [vmem:[%s1716 + $0x18] sm:$0xf]
    %v1724 = vld [vmem:[%s1716 + $0x1c] sm:$0xf]
    %v1725 = vld [vmem:[%s1716 + $0x20] sm:$0xf]
    %v1726 = vld [vmem:[%s1716 + $0x24] sm:$0xf]
    %v1727 = vld [vmem:[%s1716 + $0x28] sm:$0xf]
    %v1728 = vld [vmem:[%s1716 + $0x2c] sm:$0xf]
    %v1729 = vld [vmem:[%s1716 + $0x30] sm:$0xf]
    %v1730 = vld [vmem:[%s1716 + $0x34] sm:$0xf]
    %v1731 = vld [vmem:[%s1716 + $0x38] sm:$0xf]
    %v1732 = vld [vmem:[%s1716 + $0x3c] sm:$0xf]
    %s1733 = scalar_lea.vmem %s4, 4
    %v1734 = vld [vmem:[%s1733] sm:$0x1]
    %v1736 = vlaneseq
    %v1737 = vshrl.u32 %v1736, 7
    %v1738 = vsub.s32 0, %v1737
    %v1739 = vrot.slane %v1734, %v1738
    %v1757 = vunpack.c.l.b16 %v1717
    %v1758 = vunpack.c.l.b16 %v1718
    %v1759 = vunpack.c.l.b16 %v1719
    %v1760 = vunpack.c.l.b16 %v1720
    %v1761 = vunpack.c.l.b16 %v1721
    %v1762 = vunpack.c.l.b16 %v1722
    %v1763 = vunpack.c.l.b16 %v1723
    %v1764 = vunpack.c.l.b16 %v1724
    %v1765 = vunpack.c.l.b16 %v1725
    %v1766 = vunpack.c.l.b16 %v1726
    %v1767 = vunpack.c.l.b16 %v1727
    %v1768 = vunpack.c.l.b16 %v1728
    %v1769 = vunpack.c.l.b16 %v1729
    %v1770 = vunpack.c.l.b16 %v1730
    %v1771 = vunpack.c.l.b16 %v1731
    %v1772 = vunpack.c.l.b16 %v1732
    %v1773 = vpack.c.b16 %v1758, %v1757
    %v1774 = vpack.c.b16 %v1760, %v1759
    %v1775 = vpack.c.b16 %v1762, %v1761
    %v1776 = vpack.c.b16 %v1764, %v1763
    %v1777 = vpack.c.b16 %v1766, %v1765
    %v1778 = vpack.c.b16 %v1768, %v1767
    %v1779 = vpack.c.b16 %v1770, %v1769
    %v1780 = vpack.c.b16 %v1772, %v1771
    %1789 = vmatprep.subr.bf16.mxu0 0
    %1790 = vmatpush1.bf16.msra.mxu0 %v1780
    %1791 = vmatprep.subr.bf16.mxu0 0
    %1792 = vmatpush1.bf16.msra.mxu0 %v1779
    %1793 = vmatprep.subr.bf16.mxu0 0
    %1794 = vmatpush1.bf16.msra.mxu0 %v1778
    %1795 = vmatprep.subr.bf16.mxu0 0
    %1796 = vmatpush1.bf16.msra.mxu0 %v1777
    %1797 = vmatprep.subr.bf16.mxu0 0
    %1798 = vmatpush1.bf16.msra.mxu0 %v1776
    %1799 = vmatprep.subr.bf16.mxu0 0
    %1800 = vmatpush1.bf16.msra.mxu0 %v1775
    %1801 = vmatprep.subr.bf16.mxu0 0
    %1802 = vmatpush1.bf16.msra.mxu0 %v1774
    %1803 = vmatprep.subr.bf16.mxu0 0
    %1804 = vmatpush1.bf16.msra.mxu0 %v1773
    %1805 = vmatprep.subr.bf16.mxu0 0
    %1806 = vmatpush2.bf16.msra.mxu0 0
    %1807 = vmatprep.subr.bf16.mxu0 0
    %1808 = vmatpush2.bf16.msra.mxu0 0
    %1809 = vmatprep.subr.bf16.mxu0 0
    %1810 = vmatpush2.bf16.msra.mxu0 0
    %1811 = vmatprep.subr.bf16.mxu0 0
    %1812 = vmatpush2.bf16.msra.mxu0 0
    %1813 = vmatprep.subr.bf16.mxu0 0
    %1814 = vmatpush2.bf16.msra.mxu0 0
    %1815 = vmatprep.subr.bf16.mxu0 0
    %1816 = vmatpush2.bf16.msra.mxu0 0
    %1817 = vmatprep.subr.bf16.mxu0 0
    %1818 = vmatpush2.bf16.msra.mxu0 0
    %1819 = vmatprep.subr.bf16.mxu0 0
    %1820 = vmatpush2.bf16.msra.mxu0 0
    %1821 = vmatprep.mubr.bf16.mxu0 0
    %1822 = vmatmul.mubr.bf16.gmra.mxu0 %v1454
    %v1823 = vpop.f32.mrf.mxu0
    %v1824 = vadd.f32 %v1739, %v1823
    %v1825 = vpop.f32.mrf.mxu0
    %v1826 = vpop.f32.mrf.mxu0
    %v1827 = vpop.f32.mrf.mxu0
    %1828 = vdwg.mxu0
    %v1829 = vxor.u32 %v1824, 2147483648
    %v1830 = vmul.f32 %v1829, 1.442695
    %v1831 = vpow.pop %v1830
    %v1832 = vadd.f32 %v1831, 1.0
    %v1833 = vrcp.pop %v1832
    %v1834 = vmul.f32 1.0, %v1833
    %v1835 = vpack.c.bf16 %v1449, %v1449
    %1836 = vmatprep.subr.bf16.mxu0 0
    %1837 = vmatpush1.bf16.msra.mxu0 %v1780
    %1838 = vmatprep.subr.bf16.mxu0 0
    %1839 = vmatpush1.bf16.msra.mxu0 %v1779
    %1840 = vmatprep.subr.bf16.mxu0 0
    %1841 = vmatpush1.bf16.msra.mxu0 %v1778
    %1842 = vmatprep.subr.bf16.mxu0 0
    %1843 = vmatpush1.bf16.msra.mxu0 %v1777
    %1844 = vmatprep.subr.bf16.mxu0 0
    %1845 = vmatpush1.bf16.msra.mxu0 %v1776
    %1846 = vmatprep.subr.bf16.mxu0 0
    %1847 = vmatpush1.bf16.msra.mxu0 %v1775
    %1848 = vmatprep.subr.bf16.mxu0 0
    %1849 = vmatpush1.bf16.msra.mxu0 %v1774
    %1850 = vmatprep.subr.bf16.mxu0 0
    %1851 = vmatpush1.bf16.msra.mxu0 %v1773
    %1852 = vmatprep.subr.bf16.mxu0 0
    %1853 = vmatpush2.bf16.msra.mxu0 0
    %1854 = vmatprep.subr.bf16.mxu0 0
    %1855 = vmatpush2.bf16.msra.mxu0 0
    %1856 = vmatprep.subr.bf16.mxu0 0
    %1857 = vmatpush2.bf16.msra.mxu0 0
    %1858 = vmatprep.subr.bf16.mxu0 0
    %1859 = vmatpush2.bf16.msra.mxu0 0
    %1860 = vmatprep.subr.bf16.mxu0 0
    %1861 = vmatpush2.bf16.msra.mxu0 0
    %1862 = vmatprep.subr.bf16.mxu0 0
    %1863 = vmatpush2.bf16.msra.mxu0 0
    %1864 = vmatprep.subr.bf16.mxu0 0
    %1865 = vmatpush2.bf16.msra.mxu0 0
    %1866 = vmatprep.subr.bf16.mxu0 0
    %1867 = vmatpush2.bf16.msra.mxu0 0
    %1868 = vmatprep.mubr.bf16.mxu0 0
    %1869 = vmatmul.mubr.bf16.gmra.mxu0 %v1835
    %v1870 = vpop.f32.mrf.mxu0
    %v1871 = vadd.f32 %v1739, %v1870
    %v1872 = vpop.f32.mrf.mxu0
    %v1873 = vpop.f32.mrf.mxu0
    %v1874 = vpop.f32.mrf.mxu0
    %1875 = vdwg.mxu0
    %v1876 = vxor.u32 %v1871, 2147483648
    %v1877 = vmul.f32 %v1876, 1.442695
    %v1878 = vpow.pop %v1877
    %v1879 = vadd.f32 %v1878, 1.0
    %v1880 = vrcp.pop %v1879
    %v1881 = vmul.f32 1.0, %v1880
    %s1882 = scalar_lea.vmem [#allocation11], 16
    %v1883 = vld [vmem:[%s1882] sm:$0xff]
    %v1884 = vmul.f32 %v1834, %v1883
    %1885 = vadd.xlane.f32.xlu0 %v1884
    %v1886 = vpop.xlane.xlu0 %1885
    %v1887 = vrot.slane %v1886, 4
    %v1888 = vadd.f32 %v1886, %v1887
    %v1889 = vrot.slane %v1888, 2
    %v1890 = vadd.f32 %v1888, %v1889
    %v1891 = vrot.slane %v1890, 1
    %v1892 = vadd.f32 %v1890, %v1891
    %s1893 = vtos %v1892
    %s1894 = scalar_lea.vmem [#allocation11], 24
    %v1895 = vld [vmem:[%s1894] sm:$0xff]
    %v1896 = vmul.f32 %v1881, %v1895
    %1897 = vadd.xlane.f32.xlu0 %v1896
    %v1898 = vpop.xlane.xlu0 %1897
    %v1899 = vrot.slane %v1898, 4
    %v1900 = vadd.f32 %v1898, %v1899
    %v1901 = vrot.slane %v1900, 2
    %v1902 = vadd.f32 %v1900, %v1901
    %v1903 = vrot.slane %v1902, 1
    %v1904 = vadd.f32 %v1902, %v1903
    %s1905 = vtos %v1904
    %s1906 = sadd.f32 %s1893, %s1905
    %s1907 = sand.u32 2147483647, %s1906
    %s1908 = sld [smem:[#allocation2]]
    %s1909 = smul.f32 %s1908, %s1907
    %s1910 = sadd.f32 %s1715, %s1909
    %v1911 = vlaneseq
    %v1912 = vshrl.u32 %v1911, 7
    %vm1913 = vcmp.eq.s32.totalorder %v1912, 0
    %vm1914 = vcmp.eq.s32.totalorder %v1912, 1
    %v1915 = vstv %s1907
    %v1916 = vstv %s1910
    %v1917 = vsel %vm1914, %v1915, %v1916
    %v1918 = vstv %s1715
    %v1919 = vsel %vm1913, %v1918, %v1917
    %1920 = vst [vmem:[#allocation12] sm:$0xff] %v1919
    // Predicated region
    $region50: #{tpu_custom_call.1} parent=1 // pred_check
      _
    $region51: #{tpu_custom_call.1} parent=1 // pred_check_branch
      %1922 = sbr.rel (0) target = $region53
    $region52: #{tpu_custom_call.1} parent=1 // pred_region
      %s1924 = ssub.s32 128, 128
      %1925 = vsyncadd [#allocation5], %s1924
      %s1927 = sshll.u32 [#allocation12], 4
      %s1928 = int_to_ptr.vmem [resolvable:$true] %s1927
      %1930 = dma.vmem_to_hbm [thread:$0]  %s1928, 128, %s7, [#allocation5]
    $region53: #{tpu_custom_call.1} parent=1 // pred_fallthru
      _
    // Predicated region
    $region54: #{tpu_custom_call.1} parent=1 // pred_check
      _
    $region55: #{tpu_custom_call.1} parent=1 // pred_check_branch
      %1932 = sbr.rel (0) target = $region57
    $region56: #{tpu_custom_call.1} parent=1 // pred_region
      %1933 = dma.done [#allocation5], 128
    $region57: #{tpu_custom_call.1} parent=1 // pred_fallthru
      _
    %1934 = vsyncpa [#allocation4], 1
    %1935 = vsyncpa [#allocation7], 1
    %1936 = vsyncpa [#allocation10], 1
    %1937 = vsyncpa [#allocation5], 1

</llo_original>
